<compile_context>
chip_gen: v7x
topology: tpu7x:2x2x1
jax: 0.10.0
libtpu: 0.0.40
codegen_flags: <defaults>
</compile_context>

<pallas_src>
import jax
import jax.numpy as jnp
import numpy as np
from jax.experimental import pallas as pl
from jax.experimental.pallas import tpu as pltpu


# ---------------------------------------------------------------------------
# Kernels
# ---------------------------------------------------------------------------
def _encoder_kernel(x_ref, w1_ref, b1_ref, w2_ref, b2_ref, w3_ref, b3_ref,
                    g_ref):
    """Shared per-point MLP + running max over point tiles.

    x_ref: [1, TN, 3]   one point tile of one batch element
    g_ref: [1, 1, 1024] running max, revisited across the point-tile grid axis
    """
    t = pl.program_id(1)
    x = x_ref[0]                                     # [TN, 3]

    # Layer 1 (3 -> 64): three VPU broadcast-FMAs (overlaps with MXU below).
    w1 = w1_ref[...]                                 # [3, 64]
    h = (x[:, 0:1] * w1[0:1, :]
         + x[:, 1:2] * w1[1:2, :]
         + x[:, 2:3] * w1[2:3, :]
         + b1_ref[...])
    h = jnp.maximum(h, 0.0)                          # [TN, 64]

    # Layer 2 (64 -> 128) and layer 3 (128 -> 1024) on the MXU (BN folded).
    h = jnp.dot(h, w2_ref[...], preferred_element_type=jnp.float32) + b2_ref[...]
    h = jnp.maximum(h, 0.0)                          # [TN, 128]
    h = jnp.dot(h, w3_ref[...], preferred_element_type=jnp.float32) + b3_ref[...]
    # NOTE: no ReLU after conv3 (matches PyTorch: max is taken on conv3 output).

    tile_max = jnp.max(h, axis=0, keepdims=True).reshape(1, 1, -1)  # [1,1,1024]

    @pl.when(t == 0)
    def _init():
        g_ref[...] = tile_max

    @pl.when(t != 0)
    def _accum():
        g_ref[...] = jnp.maximum(g_ref[...], tile_max)


def _decoder_head_kernel(g_ref, fw1_ref, fb1_ref, fw2_ref, fb2_ref,
                         fw3_ref, fb3_ref, y3_ref):
    """fc1 -> fc2 -> fc3 (+ folded BN, ReLU).  Everything here is small."""
    y = jnp.dot(g_ref[...], fw1_ref[...],
                preferred_element_type=jnp.float32) + fb1_ref[...]
    y = jnp.maximum(y, 0.0)                                       # [B, n1]
    y = jnp.dot(y, fw2_ref[...],
                preferred_element_type=jnp.float32) + fb2_ref[...]
    y = jnp.maximum(y, 0.0)                                       # [B, n2]
    # TODO(synk): Dropout(p=0.3) is identity in eval mode; training-mode
    # stochastic dropout is not implemented.
    y = jnp.dot(y, fw3_ref[...],
                preferred_element_type=jnp.float32) + fb3_ref[...]
    y3_ref[...] = jnp.maximum(y, 0.0).astype(y3_ref.dtype)        # [B, N] bf16


def _decoder_out_kernel(y3_ref, fw4_ref, fb4_ref, out_ref):
    """Final Linear(N -> 3N), column-tiled: fw4 streams from HBM in bf16."""
    out_ref[...] = (jnp.dot(y3_ref[...], fw4_ref[...],
                            preferred_element_type=jnp.float32)
                    + fb4_ref[...])


# ---------------------------------------------------------------------------
# Wrapper / parameters
# ---------------------------------------------------------------------------
def _choose_point_tile(n):
    # Prefer large point tiles (fewer grid steps, fills the MXU rows); keep the
    # sublane dim a multiple of 8 when possible.
    for t in (512, 256, 128, 64, 32, 16, 8):
        if n % t == 0:
            return t
    return n


def _round_up(x, m):
    return (x + m - 1) // m * m


def _vmem_limit(resident_bytes):
    # Explicit scoped-VMEM request: footprint + headroom, floored at 32 MiB and
    # capped well under v7x's 64 MiB physical VMEM.
    return int(min(max(resident_bytes + (8 << 20), 32 << 20), 56 << 20))


def pointnet_autoencoder(pointcloud, params):
    (w1, b1, w2, b2, w3, b3,
     fw1, fb1, fw2, fb2, fw3, fb3, fw4, fb4) = params
    B, N, _ = pointcloud.shape
    n1, n2 = fw1.shape[1], fw2.shape[1]
    F32 = 4

    # ---------------- Encoder: global feature [B, 1024] ----------------
    TN = _choose_point_tile(N)
    num_tiles = N // TN
    enc_resident = (2 * TN * 3 * F32                              # x tiles (2-buf)
                    + (3 * 64 + 64 + 64 * 128 + 128 + 128 * 1024 + 1024) * F32
                    + 2 * 1024 * F32                              # output block
                    + 2 * TN * (64 + 128 + 1024) * F32)           # activations
    g = pl.pallas_call(
        _encoder_kernel,
        out_shape=jax.ShapeDtypeStruct((B, 1, 1024), jnp.float32),
        grid=(B, num_tiles),
        in_specs=[
            pl.BlockSpec((1, TN, 3), lambda b, t: (b, t, 0)),
            pl.BlockSpec((3, 64), lambda b, t: (0, 0)),
            pl.BlockSpec((1, 64), lambda b, t: (0, 0)),
            pl.BlockSpec((64, 128), lambda b, t: (0, 0)),
            pl.BlockSpec((1, 128), lambda b, t: (0, 0)),
            pl.BlockSpec((128, 1024), lambda b, t: (0, 0)),
            pl.BlockSpec((1, 1024), lambda b, t: (0, 0)),
        ],
        out_specs=pl.BlockSpec((1, 1, 1024), lambda b, t: (b, 0, 0)),
        compiler_params=pltpu.CompilerParams(
            dimension_semantics=("parallel", "arbitrary"),
            vmem_limit_bytes=_vmem_limit(enc_resident),
        ),
    )(pointcloud, w1, b1, w2, b2, w3, b3)
    g = g.reshape(B, 1024)

    # ---------------- Decoder head: y3 [B, N] (bf16) ----------------
    dec1_resident = ((1024 * n1 + n1 * n2 + n2 * N) * F32
                     + (n1 + n2 + N) * F32
                     + B * 1024 * F32 + B * N * 2
                     + B * max(n1, n2, N) * F32)
    y3 = pl.pallas_call(
        _decoder_head_kernel,
        out_shape=jax.ShapeDtypeStruct((B, N), jnp.bfloat16),
        in_specs=[pl.BlockSpec(memory_space=pltpu.MemorySpace.VMEM)] * 7,
        out_specs=pl.BlockSpec(memory_space=pltpu.MemorySpace.VMEM),
        compiler_params=pltpu.CompilerParams(
            vmem_limit_bytes=_vmem_limit(dec1_resident)),
    )(g, fw1, fb1, fw2, fb2, fw3, fb3)

    # ---------------- Decoder output layer: out = y3 @ fw4 + b4 ----------------
    out_cols = 3 * N
    padded_cols = _round_up(out_cols, 128)
    col_tile = next(t for t in (1024, 512, 256, 128) if padded_cols % t == 0)
    fw4_p = jnp.pad(fw4, ((0, 0), (0, padded_cols - out_cols))).astype(jnp.bfloat16)
    fb4_p = jnp.pad(fb4, ((0, 0), (0, padded_cols - out_cols)))
    dec2_resident = (B * N * 2                        # y3 resident (bf16)
                     + 2 * N * col_tile * 2           # fw4 tiles (2-buf, bf16)
                     + 2 * col_tile * F32             # bias tiles
                     + 2 * B * col_tile * F32)        # output tiles
    out_p = pl.pallas_call(
        _decoder_out_kernel,
        out_shape=jax.ShapeDtypeStruct((B, padded_cols), jnp.float32),
        grid=(padded_cols // col_tile,),
        in_specs=[
            pl.BlockSpec((B, N), lambda j: (0, 0)),
            pl.BlockSpec((N, col_tile), lambda j: (0, j)),
            pl.BlockSpec((1, col_tile), lambda j: (0, j)),
        ],
        out_specs=pl.BlockSpec((B, col_tile), lambda j: (0, j)),
        compiler_params=pltpu.CompilerParams(
            dimension_semantics=("parallel",),
            vmem_limit_bytes=_vmem_limit(dec2_resident),
        ),
    )(y3, fw4_p, fb4_p)

    return out_p[:, :out_cols].reshape(B, N, 3)


# ---------------------------------------------------------------------------
# Parameter construction (eval-mode BN folded into the preceding layer)
# ---------------------------------------------------------------------------
def _fold_bn(w, b, gamma, beta, mean, var, eps=1e-5):
    s = gamma / jnp.sqrt(var + eps)
    return w * s[None, :], b * s + (beta - mean * s)


def _make_layer(key, c_in, c_out, scale=0.1):
    kw, kb = jax.random.split(key)
    w = scale * jax.random.normal(kw, (c_in, c_out), jnp.float32)
    b = scale * jax.random.normal(kb, (c_out,), jnp.float32)
    # Deterministic eval-mode BN stats: gamma=1, beta=0, mean=0, var=1.
    gamma = jnp.ones((c_out,), jnp.float32)
    beta = jnp.zeros((c_out,), jnp.float32)
    mean = jnp.zeros((c_out,), jnp.float32)
    var = jnp.ones((c_out,), jnp.float32)
    wf, bf = _fold_bn(w, b, gamma, beta, mean, var)
    return wf, bf.reshape(1, c_out)


def init_params(key, num_points):
    n1 = num_points // 4
    n2 = num_points // 2
    keys = jax.random.split(key, 8)
    params = []
    # Encoder: conv1(3->64)+BN, conv2(64->128)+BN, conv3(128->1024)+BN
    params += list(_make_layer(keys[0], 3, 64))
    params += list(_make_layer(keys[1], 64, 128))
    params += list(_make_layer(keys[2], 128, 1024))
    # Decoder: Linear(1024->n1)+BN, Linear(n1->n2)+BN,
    #          Linear(n2->N)+Dropout+BN, Linear(N->3N)
    params += list(_make_layer(keys[3], 1024, n1))
    params += list(_make_layer(keys[4], n1, n2))
    params += list(_make_layer(keys[5], n2, num_points))
    kw, kb = jax.random.split(keys[6])
    w4 = 0.1 * jax.random.normal(kw, (num_points, num_points * 3), jnp.float32)
    b4 = 0.1 * jax.random.normal(kb, (num_points * 3,), jnp.float32).reshape(1, -1)
    params += [w4, b4]
    return params


def pointnet_autoencoder_ref(pointcloud, params):
    """Pure-JAX f32 reference for correctness checking."""
    (w1, b1, w2, b2, w3, b3, fw1, fb1, fw2, fb2, fw3, fb3, fw4, fb4) = params
    B, N, _ = pointcloud.shape
    h = jnp.maximum(pointcloud @ w1 + b1, 0.0)
    h = jnp.maximum(h @ w2 + b2, 0.0)
    h = h @ w3 + b3
    g = jnp.max(h, axis=1)                       # [B, 1024]
    y = jnp.maximum(g @ fw1 + fb1, 0.0)
    y = jnp.maximum(y @ fw2 + fb2, 0.0)
    y = jnp.maximum(y @ fw3 + fb3, 0.0)
    y = y @ fw4 + fb4
    return y.reshape(B, N, 3)


if __name__ == "__main__":
    B = 2
    num_points = 64  # divisible by 4 so n1=N/4, n2=N/2 are exact

    key = jax.random.PRNGKey(0)
    k_x, k_p = jax.random.split(key)
    pointcloud = jax.random.normal(k_x, (B, num_points, 3), jnp.float32)
    params = init_params(k_p, num_points)

    out = pointnet_autoencoder(pointcloud, params)
    out = jax.block_until_ready(out)
    assert out.shape == (B, num_points, 3), out.shape

    ref = jax.block_until_ready(pointnet_autoencoder_ref(pointcloud, params))
    np.testing.assert_allclose(np.asarray(out), np.asarray(ref),
                               rtol=2e-2, atol=2e-2)

    print("KERNEL_OK")
</pallas_src>

<mosaic_0001>
module attributes {stable_mosaic.version = 11 : i64} {
  func.func @_encoder_kernel(%arg0: i32, %arg1: i32, %arg2: memref<1x64x3xf32, #tpu.memory_space<vmem>>, %arg3: memref<3x64xf32, #tpu.memory_space<vmem>>, %arg4: memref<1x64xf32, #tpu.memory_space<vmem>>, %arg5: memref<64x128xf32, #tpu.memory_space<vmem>>, %arg6: memref<1x128xf32, #tpu.memory_space<vmem>>, %arg7: memref<128x1024xf32, #tpu.memory_space<vmem>>, %arg8: memref<1x1024xf32, #tpu.memory_space<vmem>>, %arg9: memref<1x1x1024xf32, #tpu.memory_space<vmem>>) attributes {dimension_semantics = [#tpu.dimension_semantics<parallel>, #tpu.dimension_semantics<arbitrary>], iteration_bounds = array<i64: 2, 1>, scalar_prefetch = 0 : i64, scratch_operands = 0 : i64, tpu.core_type = #tpu.core_type<tc>, window_params = [{transform_indices = @transform_0, window_bounds = array<i64: 1, 64, 3>}, {pipeline_mode = #tpu.pipeline_mode<synchronous>, transform_indices = @transform_1, window_bounds = array<i64: 3, 64>}, {pipeline_mode = #tpu.pipeline_mode<synchronous>, transform_indices = @transform_2, window_bounds = array<i64: 1, 64>}, {pipeline_mode = #tpu.pipeline_mode<synchronous>, transform_indices = @transform_3, window_bounds = array<i64: 64, 128>}, {pipeline_mode = #tpu.pipeline_mode<synchronous>, transform_indices = @transform_4, window_bounds = array<i64: 1, 128>}, {pipeline_mode = #tpu.pipeline_mode<synchronous>, transform_indices = @transform_5, window_bounds = array<i64: 128, 1024>}, {pipeline_mode = #tpu.pipeline_mode<synchronous>, transform_indices = @transform_6, window_bounds = array<i64: 1, 1024>}, {transform_indices = @transform_7, window_bounds = array<i64: 1, 1, 1024>}]} {
    %c0 = arith.constant 0 : index
    %c0_0 = arith.constant 0 : index
    %c0_1 = arith.constant 0 : index
    %0 = vector.load %arg2[%c0, %c0_0, %c0_1] : memref<1x64x3xf32, #tpu.memory_space<vmem>>, vector<1x64x3xf32>
    %1 = vector.shape_cast %0 : vector<1x64x3xf32> to vector<64x3xf32>
    %c0_2 = arith.constant 0 : index
    %c0_3 = arith.constant 0 : index
    %2 = vector.load %arg3[%c0_2, %c0_3] : memref<3x64xf32, #tpu.memory_space<vmem>>, vector<3x64xf32>
    %3 = vector.extract_strided_slice %1 {offsets = [0, 0], sizes = [64, 1], strides = [1, 1]} : vector<64x3xf32> to vector<64x1xf32>
    %4 = vector.extract_strided_slice %2 {offsets = [0, 0], sizes = [1, 64], strides = [1, 1]} : vector<3x64xf32> to vector<1x64xf32>
    %5 = vector.broadcast %3 : vector<64x1xf32> to vector<64x64xf32>
    %6 = vector.broadcast %4 : vector<1x64xf32> to vector<64x64xf32>
    %7 = arith.mulf %5, %6 : vector<64x64xf32>
    %8 = vector.extract_strided_slice %1 {offsets = [0, 1], sizes = [64, 1], strides = [1, 1]} : vector<64x3xf32> to vector<64x1xf32>
    %9 = vector.extract_strided_slice %2 {offsets = [1, 0], sizes = [1, 64], strides = [1, 1]} : vector<3x64xf32> to vector<1x64xf32>
    %10 = vector.broadcast %8 : vector<64x1xf32> to vector<64x64xf32>
    %11 = vector.broadcast %9 : vector<1x64xf32> to vector<64x64xf32>
    %12 = arith.mulf %10, %11 : vector<64x64xf32>
    %13 = arith.addf %7, %12 : vector<64x64xf32>
    %14 = vector.extract_strided_slice %1 {offsets = [0, 2], sizes = [64, 1], strides = [1, 1]} : vector<64x3xf32> to vector<64x1xf32>
    %15 = vector.extract_strided_slice %2 {offsets = [2, 0], sizes = [1, 64], strides = [1, 1]} : vector<3x64xf32> to vector<1x64xf32>
    %16 = vector.broadcast %14 : vector<64x1xf32> to vector<64x64xf32>
    %17 = vector.broadcast %15 : vector<1x64xf32> to vector<64x64xf32>
    %18 = arith.mulf %16, %17 : vector<64x64xf32>
    %19 = arith.addf %13, %18 : vector<64x64xf32>
    %c0_4 = arith.constant 0 : index
    %c0_5 = arith.constant 0 : index
    %20 = vector.load %arg4[%c0_4, %c0_5] : memref<1x64xf32, #tpu.memory_space<vmem>>, vector<1x64xf32>
    %21 = vector.broadcast %20 : vector<1x64xf32> to vector<64x64xf32>
    %22 = arith.addf %19, %21 : vector<64x64xf32>
    %cst = arith.constant 0.000000e+00 : f32
    %23 = vector.broadcast %cst : f32 to vector<64x64xf32>
    %24 = arith.maximumf %22, %23 : vector<64x64xf32>
    %c0_6 = arith.constant 0 : index
    %c0_7 = arith.constant 0 : index
    %25 = vector.load %arg5[%c0_6, %c0_7] : memref<64x128xf32, #tpu.memory_space<vmem>>, vector<64x128xf32>
    %cst_8 = arith.constant dense<0.000000e+00> : vector<64x128xf32>
    %26 = tpu.matmul %24, %25, %cst_8 {dimension_numbers = #tpu.dot_dimension_numbers<[1], [0], [0], [1], [0, 0, 1, 1], [], []>} : vector<64x64xf32>, vector<64x128xf32>, vector<64x128xf32> -> vector<64x128xf32>
    %c0_9 = arith.constant 0 : index
    %c0_10 = arith.constant 0 : index
    %27 = vector.load %arg6[%c0_9, %c0_10] : memref<1x128xf32, #tpu.memory_space<vmem>>, vector<1x128xf32>
    %28 = vector.broadcast %27 : vector<1x128xf32> to vector<64x128xf32>
    %29 = arith.addf %26, %28 : vector<64x128xf32>
    %cst_11 = arith.constant 0.000000e+00 : f32
    %30 = vector.broadcast %cst_11 : f32 to vector<64x128xf32>
    %31 = arith.maximumf %29, %30 : vector<64x128xf32>
    %c0_12 = arith.constant 0 : index
    %c0_13 = arith.constant 0 : index
    %32 = vector.load %arg7[%c0_12, %c0_13] : memref<128x1024xf32, #tpu.memory_space<vmem>>, vector<128x1024xf32>
    %cst_14 = arith.constant dense<0.000000e+00> : vector<64x1024xf32>
    %33 = tpu.matmul %31, %32, %cst_14 {dimension_numbers = #tpu.dot_dimension_numbers<[1], [0], [0], [1], [0, 0, 1, 1], [], []>} : vector<64x128xf32>, vector<128x1024xf32>, vector<64x1024xf32> -> vector<64x1024xf32>
    %c0_15 = arith.constant 0 : index
    %c0_16 = arith.constant 0 : index
    %34 = vector.load %arg8[%c0_15, %c0_16] : memref<1x1024xf32, #tpu.memory_space<vmem>>, vector<1x1024xf32>
    %35 = vector.broadcast %34 : vector<1x1024xf32> to vector<64x1024xf32>
    %36 = arith.addf %33, %35 : vector<64x1024xf32>
    %cst_17 = arith.constant dense<0xFF800000> : vector<1024xf32>
    %37 = vector.multi_reduction <maximumf>, %36, %cst_17 [0] : vector<64x1024xf32> to vector<1024xf32>
    %38 = vector.shape_cast %37 : vector<1024xf32> to vector<1x1024xf32>
    %39 = vector.shape_cast %38 : vector<1x1024xf32> to vector<1x1x1024xf32>
    %c0_i32 = arith.constant 0 : i32
    %40 = arith.cmpi eq, %arg1, %c0_i32 : i32
    %41 = arith.extui %40 : i1 to i32
    %c0_i32_18 = arith.constant 0 : i32
    %42 = arith.cmpi ne, %41, %c0_i32_18 : i32
    scf.if %42 {
      %c0_21 = arith.constant 0 : index
      %c0_22 = arith.constant 0 : index
      %c0_23 = arith.constant 0 : index
      %46 = vector.load %arg9[%c0_21, %c0_22, %c0_23] : memref<1x1x1024xf32, #tpu.memory_space<vmem>>, vector<1x1x1024xf32>
      tpu.vector_store %arg9[%c0_21, %c0_22, %c0_23], %39 {strides = array<i32>} : memref<1x1x1024xf32, #tpu.memory_space<vmem>>, vector<1x1x1024xf32>,
    } else {
    }
    %c0_i32_19 = arith.constant 0 : i32
    %43 = arith.cmpi ne, %arg1, %c0_i32_19 : i32
    %44 = arith.extui %43 : i1 to i32
    %c0_i32_20 = arith.constant 0 : i32
    %45 = arith.cmpi ne, %44, %c0_i32_20 : i32
    scf.if %45 {
      %c0_21 = arith.constant 0 : index
      %c0_22 = arith.constant 0 : index
      %c0_23 = arith.constant 0 : index
      %46 = vector.load %arg9[%c0_21, %c0_22, %c0_23] : memref<1x1x1024xf32, #tpu.memory_space<vmem>>, vector<1x1x1024xf32>
      %47 = arith.maximumf %46, %39 : vector<1x1x1024xf32>
      %c0_24 = arith.constant 0 : index
      %c0_25 = arith.constant 0 : index
      %c0_26 = arith.constant 0 : index
      %48 = vector.load %arg9[%c0_24, %c0_25, %c0_26] : memref<1x1x1024xf32, #tpu.memory_space<vmem>>, vector<1x1x1024xf32>
      tpu.vector_store %arg9[%c0_24, %c0_25, %c0_26], %47 {strides = array<i32>} : memref<1x1x1024xf32, #tpu.memory_space<vmem>>, vector<1x1x1024xf32>,
    } else {
    }
    return
  }
  func.func @transform_0(%arg0: i32, %arg1: i32) -> (i32, i32, i32) {
    %c0_i32 = arith.constant 0 : i32
    %c0_i32_0 = arith.constant 0 : i32
    return %arg0, %arg1, %c0_i32 : i32, i32, i32
  }
  func.func @transform_1(%arg0: i32, %arg1: i32) -> (i32, i32) {
    %c0_i32 = arith.constant 0 : i32
    %c0_i32_0 = arith.constant 0 : i32
    %c0_i32_1 = arith.constant 0 : i32
    return %c0_i32, %c0_i32_0 : i32, i32
  }
  func.func @transform_2(%arg0: i32, %arg1: i32) -> (i32, i32) {
    %c0_i32 = arith.constant 0 : i32
    %c0_i32_0 = arith.constant 0 : i32
    %c0_i32_1 = arith.constant 0 : i32
    return %c0_i32, %c0_i32_0 : i32, i32
  }
  func.func @transform_3(%arg0: i32, %arg1: i32) -> (i32, i32) {
    %c0_i32 = arith.constant 0 : i32
    %c0_i32_0 = arith.constant 0 : i32
    %c0_i32_1 = arith.constant 0 : i32
    return %c0_i32, %c0_i32_0 : i32, i32
  }
  func.func @transform_4(%arg0: i32, %arg1: i32) -> (i32, i32) {
    %c0_i32 = arith.constant 0 : i32
    %c0_i32_0 = arith.constant 0 : i32
    %c0_i32_1 = arith.constant 0 : i32
    return %c0_i32, %c0_i32_0 : i32, i32
  }
  func.func @transform_5(%arg0: i32, %arg1: i32) -> (i32, i32) {
    %c0_i32 = arith.constant 0 : i32
    %c0_i32_0 = arith.constant 0 : i32
    %c0_i32_1 = arith.constant 0 : i32
    return %c0_i32, %c0_i32_0 : i32, i32
  }
  func.func @transform_6(%arg0: i32, %arg1: i32) -> (i32, i32) {
    %c0_i32 = arith.constant 0 : i32
    %c0_i32_0 = arith.constant 0 : i32
    %c0_i32_1 = arith.constant 0 : i32
    return %c0_i32, %c0_i32_0 : i32, i32
  }
  func.func @transform_7(%arg0: i32, %arg1: i32) -> (i32, i32, i32) {
    %c0_i32 = arith.constant 0 : i32
    %c0_i32_0 = arith.constant 0 : i32
    %c0_i32_1 = arith.constant 0 : i32
    return %arg0, %c0_i32, %c0_i32_0 : i32, i32, i32
  }
}

</mosaic_0001>

<llo_original>
// kernel: tpu_custom_call.1
$region0: #{tpu_custom_call.1}
  #allocation0 [shape = 'u32[]', space=smem, size = 0x4, offset = 0x4, fixed_abs, tag = 'smem constant byte address 0x4 - core index']
  #allocation1 [shape = 'u32[144,128]{1,0:T(1,128)}', space=vmem, size = 0x12000, scoped, tag = 'internal scratch']
  %s0 = inlined_call_operand.vmem [shape: f32[2,64,3], index: 0, kind: input, shape index: {}]
  %s1 = inlined_call_operand.vmem [shape: f32[3,64], index: 1, kind: input, shape index: {}]
  %s2 = inlined_call_operand.vmem [shape: f32[1,64], index: 2, kind: input, shape index: {}]
  %s3 = inlined_call_operand.vmem [shape: f32[64,128], index: 3, kind: input, shape index: {}]
  %s4 = inlined_call_operand.vmem [shape: f32[1,128], index: 4, kind: input, shape index: {}]
  %s5 = inlined_call_operand.hbm [shape: f32[128,1024], index: 5, kind: input, shape index: {}]
  %s6 = inlined_call_operand.vmem [shape: f32[1,1024], index: 6, kind: input, shape index: {}]
  %s7 = inlined_call_operand.hbm [shape: f32[2,1,1024], index: 7, kind: output, shape index: {}]
  %s8 = sld [smem:[#allocation0]]
  $region73: #{tpu_custom_call.1} parent=0
    _
  %s10 = ssub.s32 1, %s8
  %s11 = scalar_select 0, %s10, %s8
  $region1: #{tpu_custom_call.1} parent=0
    #allocation2 [shape = 'u8[524288]{0}', space=vmem, size = 0x80000, scoped, tag = 'input window, operand 5, single buffered']
    #allocation3 [shape = 's32[2]{0}', space=sflag, size = 0x8, scoped, tag = 'scoped memory for tpu_custom_call.1']
    #allocation4 [shape = 's32[2]{0}', space=sflag, size = 0x8, scoped, tag = 'scoped memory for tpu_custom_call.1']
    #allocation5 [shape = 'u8[8192]{0}', space=vmem, size = 0x2000, scoped, tag = 'output window, operand 0']
    %12 = vsyncpa [#allocation3], 0
    %13 = vsyncpa [#allocation4], 0
    %s14 = scalar_lea.sflag [#allocation4], 1
    %15 = vsyncpa %s14, 0
    loop: start=0, step=1, limit=4
    $region2: #{tpu_custom_call.1} parent=1 // loop_pre_header
      _
    $region3: #{tpu_custom_call.1} parent=1 // loop_header
      %s17 = sphi 0, %s21
      %p18 = scmp.ge.s32.totalorder %s17, 4
      %s24 = sphi 0, %s36
      %s25 = sphi 0, %s32
      %s26 = sphi 0, %s24
      %s27 = sphi 0, %s25
      %s28 = sphi 0, %s26
      %s29 = sphi 0, %s27
      %s41 = sphi 0, %s43
      %s44 = sphi 0, %s41
      %s45 = sphi 0, %s44
      %s61 = sphi 0, %s45
      %s65 = sphi 0, %s65
      %s67 = sphi 0, %s65
      %s68 = sphi 0, %s67
      %s82 = sphi 0, %s68
      %s86 = sphi 0, %s86
      %s88 = sphi 0, %s86
      %s89 = sphi 0, %s88
      %s103 = sphi 0, %s89
      %s107 = sphi 0, %s107
      %s109 = sphi 0, %s107
      %s110 = sphi 0, %s109
      %s124 = sphi 0, %s110
      %s128 = sphi 0, %s128
      %s130 = sphi 0, %s128
      %s131 = sphi 0, %s130
      %s145 = sphi 0, %s131
      %s149 = sphi 0, %s149
      %s151 = sphi 0, %s149
      %s152 = sphi 0, %s151
      %s166 = sphi 0, %s152
      %s170 = sphi 0, %s170
      %s172 = sphi 0, %s170
      %s173 = sphi 0, %s172
      %s187 = sphi 0, %s173
      %s193 = sphi 0, %s195
      %s196 = sphi 0, %s193
      %s197 = sphi 0, %s196
      %s213 = sphi 0, %s197
    $region4: #{tpu_custom_call.1} parent=1 // loop_header_branch
      %20 = sbr.rel (%p18) target = $region8
    $region5: #{tpu_custom_call.1} parent=1 // loop_body
      %s22 = ssub.s32 %s17, 1
      %s23 = ssub.s32 %s17, 2
      %s30 = sadd.s32 1, %s25
      %p31 = scmp.ge.s32.totalorder %s30, 1
      %s32 = scalar_select %p31, 0, %s30
      %s33 = sadd.s32 1, %s24
      %s34 = scalar_select %p31, %s33, %s24
      %p35 = scmp.ge.s32.totalorder %s34, 2
      %s36 = scalar_select %p35, 0, %s34
      %s37 = ssub.s32 %s24, %s36
      %s38 = ssub.s32 %s25, %s32
      %s39 = sor.u32 %s37, %s38
      %p40 = scmp.eq.s32.totalorder %s39, 0
      %s42 = sadd.s32 %s41, 1
      %s43 = scalar_select %p40, %s41, %s42
      %p46 = pneg %p40
      %p47 = scmp.eq.s32.totalorder %s17, 1
      %p48 = por %p46, %p47
      %p49 = scmp.ne.s32.totalorder %s41, %s44
      %p50 = scmp.eq.s32.totalorder %s17, 0
      %p51 = por %p49, %p50
      %p52 = scmp.ne.s32.totalorder %s41, %s44
      %p53 = scmp.eq.s32.totalorder %s22, 1
      %p54 = por %p52, %p53
      %p55 = scmp.ne.s32.totalorder %s44, %s45
      %p56 = scmp.eq.s32.totalorder %s22, 0
      %p57 = por %p55, %p56
      %p58 = scmp.ne.s32.totalorder %s44, %s45
      %p59 = scmp.eq.s32.totalorder %s23, 1
      %p60 = por %p58, %p59
      %p62 = scmp.ne.s32.totalorder %s45, %s61
      %p63 = scmp.eq.s32.totalorder %s23, 0
      %p64 = por %p62, %p63
      %s66 = sadd.s32 %s65, 1
      %p69 = scmp.eq.s32.totalorder %s17, 1
      %p70 = scmp.ne.s32.totalorder %s65, %s67
      %p71 = scmp.eq.s32.totalorder %s17, 0
      %p72 = por %p70, %p71
      %p73 = scmp.ne.s32.totalorder %s65, %s67
      %p74 = scmp.eq.s32.totalorder %s22, 1
      %p75 = por %p73, %p74
      %p76 = scmp.ne.s32.totalorder %s67, %s68
      %p77 = scmp.eq.s32.totalorder %s22, 0
      %p78 = por %p76, %p77
      %p79 = scmp.ne.s32.totalorder %s67, %s68
      %p80 = scmp.eq.s32.totalorder %s23, 1
      %p81 = por %p79, %p80
      %p83 = scmp.ne.s32.totalorder %s68, %s82
      %p84 = scmp.eq.s32.totalorder %s23, 0
      %p85 = por %p83, %p84
      %s87 = sadd.s32 %s86, 1
      %p90 = scmp.eq.s32.totalorder %s17, 1
      %p91 = scmp.ne.s32.totalorder %s86, %s88
      %p92 = scmp.eq.s32.totalorder %s17, 0
      %p93 = por %p91, %p92
      %p94 = scmp.ne.s32.totalorder %s86, %s88
      %p95 = scmp.eq.s32.totalorder %s22, 1
      %p96 = por %p94, %p95
      %p97 = scmp.ne.s32.totalorder %s88, %s89
      %p98 = scmp.eq.s32.totalorder %s22, 0
      %p99 = por %p97, %p98
      %p100 = scmp.ne.s32.totalorder %s88, %s89
      %p101 = scmp.eq.s32.totalorder %s23, 1
      %p102 = por %p100, %p101
      %p104 = scmp.ne.s32.totalorder %s89, %s103
      %p105 = scmp.eq.s32.totalorder %s23, 0
      %p106 = por %p104, %p105
      %s108 = sadd.s32 %s107, 1
      %p111 = scmp.eq.s32.totalorder %s17, 1
      %p112 = scmp.ne.s32.totalorder %s107, %s109
      %p113 = scmp.eq.s32.totalorder %s17, 0
      %p114 = por %p112, %p113
      %p115 = scmp.ne.s32.totalorder %s107, %s109
      %p116 = scmp.eq.s32.totalorder %s22, 1
      %p117 = por %p115, %p116
      %p118 = scmp.ne.s32.totalorder %s109, %s110
      %p119 = scmp.eq.s32.totalorder %s22, 0
      %p120 = por %p118, %p119
      %p121 = scmp.ne.s32.totalorder %s109, %s110
      %p122 = scmp.eq.s32.totalorder %s23, 1
      %p123 = por %p121, %p122
      %p125 = scmp.ne.s32.totalorder %s110, %s124
      %p126 = scmp.eq.s32.totalorder %s23, 0
      %p127 = por %p125, %p126
      %s129 = sadd.s32 %s128, 1
      %p132 = scmp.eq.s32.totalorder %s17, 1
      %p133 = scmp.ne.s32.totalorder %s128, %s130
      %p134 = scmp.eq.s32.totalorder %s17, 0
      %p135 = por %p133, %p134
      %p136 = scmp.ne.s32.totalorder %s128, %s130
      %p137 = scmp.eq.s32.totalorder %s22, 1
      %p138 = por %p136, %p137
      %p139 = scmp.ne.s32.totalorder %s130, %s131
      %p140 = scmp.eq.s32.totalorder %s22, 0
      %p141 = por %p139, %p140
      %p142 = scmp.ne.s32.totalorder %s130, %s131
      %p143 = scmp.eq.s32.totalorder %s23, 1
      %p144 = por %p142, %p143
      %p146 = scmp.ne.s32.totalorder %s131, %s145
      %p147 = scmp.eq.s32.totalorder %s23, 0
      %p148 = por %p146, %p147
      %s150 = sadd.s32 %s149, 1
      %p153 = scmp.eq.s32.totalorder %s17, 1
      %p154 = scmp.ne.s32.totalorder %s149, %s151
      %p155 = scmp.eq.s32.totalorder %s17, 0
      %p156 = por %p154, %p155
      %p157 = scmp.ne.s32.totalorder %s149, %s151
      %p158 = scmp.eq.s32.totalorder %s22, 1
      %p159 = por %p157, %p158
      %p160 = scmp.ne.s32.totalorder %s151, %s152
      %p161 = scmp.eq.s32.totalorder %s22, 0
      %p162 = por %p160, %p161
      %p163 = scmp.ne.s32.totalorder %s151, %s152
      %p164 = scmp.eq.s32.totalorder %s23, 1
      %p165 = por %p163, %p164
      %p167 = scmp.ne.s32.totalorder %s152, %s166
      %p168 = scmp.eq.s32.totalorder %s23, 0
      %p169 = por %p167, %p168
      %s171 = sadd.s32 %s170, 1
      %p174 = scmp.eq.s32.totalorder %s17, 1
      %p175 = scmp.ne.s32.totalorder %s170, %s172
      %p176 = scmp.eq.s32.totalorder %s17, 0
      %p177 = por %p175, %p176
      %p178 = scmp.ne.s32.totalorder %s170, %s172
      %p179 = scmp.eq.s32.totalorder %s22, 1
      %p180 = por %p178, %p179
      %p181 = scmp.ne.s32.totalorder %s172, %s173
      %p182 = scmp.eq.s32.totalorder %s22, 0
      %p183 = por %p181, %p182
      %p184 = scmp.ne.s32.totalorder %s172, %s173
      %p185 = scmp.eq.s32.totalorder %s23, 1
      %p186 = por %p184, %p185
      %p188 = scmp.ne.s32.totalorder %s173, %s187
      %p189 = scmp.eq.s32.totalorder %s23, 0
      %p190 = por %p188, %p189
      %s191 = ssub.s32 %s24, %s36
      %p192 = scmp.eq.s32.totalorder %s191, 0
      %s194 = sadd.s32 %s193, 1
      %s195 = scalar_select %p192, %s193, %s194
      %p198 = pneg %p192
      %p199 = scmp.eq.s32.totalorder %s17, 1
      %p200 = por %p198, %p199
      %p201 = scmp.ne.s32.totalorder %s193, %s196
      %p202 = scmp.eq.s32.totalorder %s17, 0
      %p203 = por %p201, %p202
      %p204 = scmp.ne.s32.totalorder %s193, %s196
      %p205 = scmp.eq.s32.totalorder %s22, 1
      %p206 = por %p204, %p205
      %p207 = scmp.ne.s32.totalorder %s196, %s197
      %p208 = scmp.eq.s32.totalorder %s22, 0
      %p209 = por %p207, %p208
      %p210 = scmp.ne.s32.totalorder %s196, %s197
      %p211 = scmp.eq.s32.totalorder %s23, 1
      %p212 = por %p210, %p211
      %p214 = scmp.ne.s32.totalorder %s197, %s213
      %p215 = scmp.eq.s32.totalorder %s23, 0
      %p216 = por %p214, %p215
      %p217 = scmp.le.s32.totalorder 1, %s17
      %p218 = scmp.lt.s32.totalorder %s17, 3
      %p219 = pnand %p217, %p218
      %p220 = pneg %p219
      // Predicated region
      $region9: #{tpu_custom_call.1} parent=5 // pred_check
        _
      $region10: #{tpu_custom_call.1} parent=5 // pred_check_branch
        %222 = sbr.rel (%p219) target = $region12
      $region11: #{tpu_custom_call.1} parent=5 // pred_region
        %s223 = ssub.s32 %s17, 1
        // Predicated region
        $region13: #{tpu_custom_call.1} parent=11 // pred_check
          %p224 = pneg %p78
        $region14: #{tpu_custom_call.1} parent=11 // pred_check_branch
          %226 = sbr.rel (%p224) target = $region16
        $region15: #{tpu_custom_call.1} parent=11 // pred_region
          _
        $region16: #{tpu_custom_call.1} parent=11 // pred_fallthru
          _
        // Predicated region
        $region17: #{tpu_custom_call.1} parent=11 // pred_check
          %p227 = pneg %p99
        $region18: #{tpu_custom_call.1} parent=11 // pred_check_branch
          %229 = sbr.rel (%p227) target = $region20
        $region19: #{tpu_custom_call.1} parent=11 // pred_region
          _
        $region20: #{tpu_custom_call.1} parent=11 // pred_fallthru
          _
        // Predicated region
        $region21: #{tpu_custom_call.1} parent=11 // pred_check
          %p230 = pneg %p120
        $region22: #{tpu_custom_call.1} parent=11 // pred_check_branch
          %232 = sbr.rel (%p230) target = $region24
        $region23: #{tpu_custom_call.1} parent=11 // pred_region
          _
        $region24: #{tpu_custom_call.1} parent=11 // pred_fallthru
          _
        // Predicated region
        $region25: #{tpu_custom_call.1} parent=11 // pred_check
          %p233 = pneg %p141
        $region26: #{tpu_custom_call.1} parent=11 // pred_check_branch
          %235 = sbr.rel (%p233) target = $region28
        $region27: #{tpu_custom_call.1} parent=11 // pred_region
          _
        $region28: #{tpu_custom_call.1} parent=11 // pred_fallthru
          _
        // Predicated region
        $region29: #{tpu_custom_call.1} parent=11 // pred_check
          %p236 = pneg %p162
        $region30: #{tpu_custom_call.1} parent=11 // pred_check_branch
          %238 = sbr.rel (%p236) target = $region32
        $region31: #{tpu_custom_call.1} parent=11 // pred_region
          %s240 = ssub.s32 16384, 16384
          %241 = vsyncadd [#allocation3], %s240
          %s242 = sshll.u32 [#allocation2], 4
          %s243 = int_to_ptr.vmem [resolvable:$true] %s242
          %248 = dma.hbm_to_vmem [thread:$0]  %s5, 16384, %s243, [#allocation3], 1024, 1024, 64
        $region32: #{tpu_custom_call.1} parent=11 // pred_fallthru
          _
        // Predicated region
        $region33: #{tpu_custom_call.1} parent=11 // pred_check
          %p249 = pneg %p183
        $region34: #{tpu_custom_call.1} parent=11 // pred_check_branch
          %251 = sbr.rel (%p249) target = $region36
        $region35: #{tpu_custom_call.1} parent=11 // pred_region
          _
        $region36: #{tpu_custom_call.1} parent=11 // pred_fallthru
          _
      $region12: #{tpu_custom_call.1} parent=5 // pred_fallthru
        _
      %p252 = scmp.lt.s32.totalorder %s17, 2
      // Predicated region
      $region37: #{tpu_custom_call.1} parent=5 // pred_check
        %p253 = pneg %p252
      $region38: #{tpu_custom_call.1} parent=5 // pred_check_branch
        %255 = sbr.rel (%p253) target = $region40
      $region39: #{tpu_custom_call.1} parent=5 // pred_region
        // Predicated region
        $region41: #{tpu_custom_call.1} parent=39 // pred_check
          %p256 = pneg %p51
        $region42: #{tpu_custom_call.1} parent=39 // pred_check_branch
          %258 = sbr.rel (%p256) target = $region44
        $region43: #{tpu_custom_call.1} parent=39 // pred_region
          %s259 = smul.u32 8, %s25
          %p260 = scmp.lt.s32.totalorder %s24, 1
          %s261 = scalar_select %p260, %s24, 1
          %p262 = scmp.lt.s32.totalorder %s259, 7
          %s263 = scalar_select %p262, %s259, 7
          %s264 = smul.addr %s261, 8
          %s265 = sadd.s32 %s263, %s264
          %s266 = smul.addr %s265, 8
          %s267 = scalar_lea.vmem %s0, %s266
          %s268 = smul.u32 8, %s25
        $region44: #{tpu_custom_call.1} parent=39 // pred_fallthru
          _
      $region40: #{tpu_custom_call.1} parent=5 // pred_fallthru
        _
      %p269 = scmp.le.s32.totalorder 1, %s17
      %p270 = scmp.lt.s32.totalorder %s17, 3
      %p271 = pnand %p269, %p270
      %p272 = pneg %p271
      // Predicated region
      $region45: #{tpu_custom_call.1} parent=5 // pred_check
        _
      $region46: #{tpu_custom_call.1} parent=5 // pred_check_branch
        %274 = sbr.rel (%p271) target = $region48
      $region47: #{tpu_custom_call.1} parent=5 // pred_region
        %s275 = ssub.s32 %s17, 1
        // Predicated region
        $region49: #{tpu_custom_call.1} parent=47 // pred_check
          %p276 = pneg %p162
        $region50: #{tpu_custom_call.1} parent=47 // pred_check_branch
          %278 = sbr.rel (%p276) target = $region52
        $region51: #{tpu_custom_call.1} parent=47 // pred_region
          %279 = dma.done [#allocation3], 16384
        $region52: #{tpu_custom_call.1} parent=47 // pred_fallthru
          _
        %s280 = smul.u32 8, %s27
        %p281 = scmp.lt.s32.totalorder %s26, 1
        %s282 = scalar_select %p281, %s26, 1
        %p283 = scmp.lt.s32.totalorder %s280, 7
        %s284 = scalar_select %p283, %s280, 7
        %s285 = smul.addr %s282, 8
        %s286 = sadd.s32 %s284, %s285
        %s287 = smul.addr %s286, 8
        %s288 = scalar_lea.vmem %s0, %s287
        %p289 = pneg %p57
        %p290 = pneg %p54
        %p291 = pneg %p78
        %p292 = pneg %p75
        %p293 = pneg %p99
        %p294 = pneg %p96
        %p295 = pneg %p120
        %p296 = pneg %p117
        %p297 = pneg %p141
        %p298 = pneg %p138
        %p299 = pneg %p162
        %p300 = pneg %p159
        %p301 = pneg %p183
        %p302 = pneg %p180
        %p303 = pneg %p209
        %p304 = pneg %p206
        %s305 = sand.u32 %s196, 1
        %s306 = scalar_lea.sflag [#allocation4], %s305
        %s307 = sand.u32 %s196, 1
        %s308 = smul.addr %s307, 8
        %s309 = scalar_lea.vmem [#allocation5], %s308
        %s310 = smul.u32 8, %s27
        %p311 = scmp.lt.s32.totalorder %s26, 1
        %s312 = scalar_select %p311, %s26, 1
        %p313 = scmp.lt.s32.totalorder %s310, 7
        %s314 = scalar_select %p313, %s310, 7
        %s315 = smul.addr %s312, 8
        %s316 = sadd.s32 %s314, %s315
        %s317 = smul.addr %s316, 8
        %s318 = scalar_lea.vmem %s0, %s317
        %s319 = smul.u32 8, %s27
        %v320 = vld [vmem:[%s318] sm:$0xff]
        %v321 = vld [vmem:[%s318 + $0x8] sm:$0xff]
        %v322 = vld [vmem:[%s318 + $0x10] sm:$0xff]
        %v323 = vld [vmem:[%s318 + $0x18] sm:$0xff]
        %v324 = vld [vmem:[%s318 + $0x20] sm:$0xff]
        %v325 = vld [vmem:[%s318 + $0x28] sm:$0xff]
        %v326 = vld [vmem:[%s318 + $0x30] sm:$0xff]
        %v327 = vld [vmem:[%s318 + $0x38] sm:$0xff]
        %v328 = vld [vmem:[%s1] sm:$0x7]
        %330 = vset.pattern.permute.xlu0 0
        %331 = vperm.xlu0 %330, %v320
        %v332 = vpop.permute.xlu0 %331
        %335 = vset.pattern.permute.xlu0 0
        %336 = vperm.xlu0 %335, %v321
        %v337 = vpop.permute.xlu0 %336
        %340 = vset.pattern.permute.xlu0 0
        %341 = vperm.xlu0 %340, %v322
        %v342 = vpop.permute.xlu0 %341
        %345 = vset.pattern.permute.xlu0 0
        %346 = vperm.xlu0 %345, %v323
        %v347 = vpop.permute.xlu0 %346
        %350 = vset.pattern.permute.xlu0 0
        %351 = vperm.xlu0 %350, %v324
        %v352 = vpop.permute.xlu0 %351
        %355 = vset.pattern.permute.xlu0 0
        %356 = vperm.xlu0 %355, %v325
        %v357 = vpop.permute.xlu0 %356
        %360 = vset.pattern.permute.xlu0 0
        %361 = vperm.xlu0 %360, %v326
        %v362 = vpop.permute.xlu0 %361
        %365 = vset.pattern.permute.xlu0 0
        %366 = vperm.xlu0 %365, %v327
        %v367 = vpop.permute.xlu0 %366
        %v369 = vlaneseq
        %v370 = vshrl.u32 %v369, 7
        %v371 = vsub.s32 0, %v370
        %v372 = vrot.slane %v328, %v371
        %v373 = vmul.f32 %v332, %v372
        %v374 = vmul.f32 %v337, %v372
        %v375 = vmul.f32 %v342, %v372
        %v376 = vmul.f32 %v347, %v372
        %v377 = vmul.f32 %v352, %v372
        %v378 = vmul.f32 %v357, %v372
        %v379 = vmul.f32 %v362, %v372
        %v380 = vmul.f32 %v367, %v372
        %381 = vset.pattern.permute.xlu0 1
        %382 = vperm.xlu0 %381, %v320
        %v383 = vpop.permute.xlu0 %382
        %385 = vset.pattern.permute.xlu0 1
        %386 = vperm.xlu0 %385, %v321
        %v387 = vpop.permute.xlu0 %386
        %389 = vset.pattern.permute.xlu0 1
        %390 = vperm.xlu0 %389, %v322
        %v391 = vpop.permute.xlu0 %390
        %393 = vset.pattern.permute.xlu0 1
        %394 = vperm.xlu0 %393, %v323
        %v395 = vpop.permute.xlu0 %394
        %397 = vset.pattern.permute.xlu0 1
        %398 = vperm.xlu0 %397, %v324
        %v399 = vpop.permute.xlu0 %398
        %401 = vset.pattern.permute.xlu0 1
        %402 = vperm.xlu0 %401, %v325
        %v403 = vpop.permute.xlu0 %402
        %405 = vset.pattern.permute.xlu0 1
        %406 = vperm.xlu0 %405, %v326
        %v407 = vpop.permute.xlu0 %406
        %409 = vset.pattern.permute.xlu0 1
        %410 = vperm.xlu0 %409, %v327
        %v411 = vpop.permute.xlu0 %410
        %v413 = vlaneseq
        %v414 = vshrl.u32 %v413, 7
        %v415 = vsub.s32 1, %v414
        %v416 = vrot.slane %v328, %v415
        %v417 = vmul.f32 %v383, %v416
        %v418 = vmul.f32 %v387, %v416
        %v419 = vmul.f32 %v391, %v416
        %v420 = vmul.f32 %v395, %v416
        %v421 = vmul.f32 %v399, %v416
        %v422 = vmul.f32 %v403, %v416
        %v423 = vmul.f32 %v407, %v416
        %v424 = vmul.f32 %v411, %v416
        %v425 = vadd.f32 %v373, %v417
        %v426 = vadd.f32 %v374, %v418
        %v427 = vadd.f32 %v375, %v419
        %v428 = vadd.f32 %v376, %v420
        %v429 = vadd.f32 %v377, %v421
        %v430 = vadd.f32 %v378, %v422
        %v431 = vadd.f32 %v379, %v423
        %v432 = vadd.f32 %v380, %v424
        %433 = vset.pattern.permute.xlu0 2
        %434 = vperm.xlu0 %433, %v320
        %v435 = vpop.permute.xlu0 %434
        %437 = vset.pattern.permute.xlu0 2
        %438 = vperm.xlu0 %437, %v321
        %v439 = vpop.permute.xlu0 %438
        %441 = vset.pattern.permute.xlu0 2
        %442 = vperm.xlu0 %441, %v322
        %v443 = vpop.permute.xlu0 %442
        %445 = vset.pattern.permute.xlu0 2
        %446 = vperm.xlu0 %445, %v323
        %v447 = vpop.permute.xlu0 %446
        %449 = vset.pattern.permute.xlu0 2
        %450 = vperm.xlu0 %449, %v324
        %v451 = vpop.permute.xlu0 %450
        %453 = vset.pattern.permute.xlu0 2
        %454 = vperm.xlu0 %453, %v325
        %v455 = vpop.permute.xlu0 %454
        %457 = vset.pattern.permute.xlu0 2
        %458 = vperm.xlu0 %457, %v326
        %v459 = vpop.permute.xlu0 %458
        %461 = vset.pattern.permute.xlu0 2
        %462 = vperm.xlu0 %461, %v327
        %v463 = vpop.permute.xlu0 %462
        %v465 = vlaneseq
        %v466 = vshrl.u32 %v465, 7
        %v467 = vsub.s32 2, %v466
        %v468 = vrot.slane %v328, %v467
        %v469 = vmul.f32 %v435, %v468
        %v470 = vmul.f32 %v439, %v468
        %v471 = vmul.f32 %v443, %v468
        %v472 = vmul.f32 %v447, %v468
        %v473 = vmul.f32 %v451, %v468
        %v474 = vmul.f32 %v455, %v468
        %v475 = vmul.f32 %v459, %v468
        %v476 = vmul.f32 %v463, %v468
        %v477 = vadd.f32 %v425, %v469
        %v478 = vadd.f32 %v426, %v470
        %v479 = vadd.f32 %v427, %v471
        %v480 = vadd.f32 %v428, %v472
        %v481 = vadd.f32 %v429, %v473
        %v482 = vadd.f32 %v430, %v474
        %v483 = vadd.f32 %v431, %v475
        %v484 = vadd.f32 %v432, %v476
        %v485 = vld [vmem:[%s2] sm:$0x1]
        %v487 = vlaneseq
        %v488 = vshrl.u32 %v487, 7
        %v489 = vsub.s32 0, %v488
        %v490 = vrot.slane %v485, %v489
        %v492 = vadd.f32 %v477, %v490
        %v493 = vadd.f32 %v478, %v490
        %v494 = vadd.f32 %v479, %v490
        %v495 = vadd.f32 %v480, %v490
        %v496 = vadd.f32 %v481, %v490
        %v497 = vadd.f32 %v482, %v490
        %v498 = vadd.f32 %v483, %v490
        %v499 = vadd.f32 %v484, %v490
        %v500 = vmax.f32 %v492, 0.0
        %v501 = vmax.f32 %v493, 0.0
        %v502 = vmax.f32 %v494, 0.0
        %v503 = vmax.f32 %v495, 0.0
        %v504 = vmax.f32 %v496, 0.0
        %v505 = vmax.f32 %v497, 0.0
        %v506 = vmax.f32 %v498, 0.0
        %v507 = vmax.f32 %v499, 0.0
        %v508 = vld [vmem:[%s3] sm:$0xff]
        %v509 = vld [vmem:[%s3 + $0x8] sm:$0xff]
        %v510 = vld [vmem:[%s3 + $0x10] sm:$0xff]
        %v511 = vld [vmem:[%s3 + $0x18] sm:$0xff]
        %v512 = vld [vmem:[%s3 + $0x20] sm:$0xff]
        %v513 = vld [vmem:[%s3 + $0x28] sm:$0xff]
        %v514 = vld [vmem:[%s3 + $0x30] sm:$0xff]
        %v515 = vld [vmem:[%s3 + $0x38] sm:$0xff]
        %v516 = vld [vmem:[%s4] sm:$0x1]
        %v518 = vlaneseq
        %v519 = vshrl.u32 %v518, 7
        %v520 = vsub.s32 0, %v519
        %v521 = vrot.slane %v516, %v520
        %vm523 = vcmask 523264
        %v525 = vsel %vm523, %v500, 0
        %v528 = vsel %vm523, %v501, 0
        %v531 = vsel %vm523, %v502, 0
        %v534 = vsel %vm523, %v503, 0
        %v537 = vsel %vm523, %v504, 0
        %v540 = vsel %vm523, %v505, 0
        %v543 = vsel %vm523, %v506, 0
        %v546 = vsel %vm523, %v507, 0
        %548 = vmatprep.subr.mxu0 0.0
        %549 = vmatpush1.msra.mxu0 %v508
        %550 = vmatprep.subr.mxu0 0.0
        %551 = vmatpush1.msra.mxu0 %v509
        %552 = vmatprep.subr.mxu0 0.0
        %553 = vmatpush1.msra.mxu0 %v510
        %554 = vmatprep.subr.mxu0 0.0
        %555 = vmatpush1.msra.mxu0 %v511
        %556 = vmatprep.subr.mxu0 0.0
        %557 = vmatpush1.msra.mxu0 %v512
        %558 = vmatprep.subr.mxu0 0.0
        %559 = vmatpush1.msra.mxu0 %v513
        %560 = vmatprep.subr.mxu0 0.0
        %561 = vmatpush1.msra.mxu0 %v514
        %562 = vmatprep.subr.mxu0 0.0
        %563 = vmatpush1.msra.mxu0 %v515
        %564 = vmatprep.subr.mxu0 0.0
        %565 = vmatpush1.msra.mxu0 0.0
        %566 = vmatprep.subr.mxu0 0.0
        %567 = vmatpush1.msra.mxu0 0.0
        %568 = vmatprep.subr.mxu0 0.0
        %569 = vmatpush1.msra.mxu0 0.0
        %570 = vmatprep.subr.mxu0 0.0
        %571 = vmatpush1.msra.mxu0 0.0
        %572 = vmatprep.subr.mxu0 0.0
        %573 = vmatpush1.msra.mxu0 0.0
        %574 = vmatprep.subr.mxu0 0.0
        %575 = vmatpush1.msra.mxu0 0.0
        %576 = vmatprep.subr.mxu0 0.0
        %577 = vmatpush1.msra.mxu0 0.0
        %578 = vmatprep.subr.mxu0 0.0
        %579 = vmatpush1.msra.mxu0 0.0
        %580 = vmatprep.subr.mxu0 0.0
        %581 = vmatpush1.msra.mxu0 0.0
        %582 = vmatprep.subr.mxu0 0.0
        %583 = vmatpush1.msra.mxu0 0.0
        %584 = vmatprep.subr.mxu0 0.0
        %585 = vmatpush1.msra.mxu0 0.0
        %586 = vmatprep.subr.mxu0 0.0
        %587 = vmatpush1.msra.mxu0 0.0
        %588 = vmatprep.subr.mxu0 0.0
        %589 = vmatpush1.msra.mxu0 0.0
        %590 = vmatprep.subr.mxu0 0.0
        %591 = vmatpush1.msra.mxu0 0.0
        %592 = vmatprep.subr.mxu0 0.0
        %593 = vmatpush1.msra.mxu0 0.0
        %594 = vmatprep.subr.mxu0 0.0
        %595 = vmatpush1.msra.mxu0 0.0
        %596 = vmatprep.subr.mxu0 0.0
        %597 = vmatpush1.msra.mxu0 0.0
        %598 = vmatprep.subr.mxu0 0.0
        %599 = vmatpush1.msra.mxu0 0.0
        %600 = vmatprep.subr.mxu0 0.0
        %601 = vmatpush1.msra.mxu0 0.0
        %602 = vmatprep.subr.mxu0 0.0
        %603 = vmatpush1.msra.mxu0 0.0
        %604 = vmatprep.subr.mxu0 0.0
        %605 = vmatpush1.msra.mxu0 0.0
        %606 = vmatprep.subr.mxu0 0.0
        %607 = vmatpush1.msra.mxu0 0.0
        %608 = vmatprep.subr.mxu0 0.0
        %609 = vmatpush1.msra.mxu0 0.0
        %610 = vmatprep.subr.mxu0 0.0
        %611 = vmatpush1.msra.mxu0 0.0
        %612 = vmatprep.mubr.f32.mxu0 0.0
        %613 = vmatmul.mubr.f32.gmra.mrb[0].mxu0 %v525
        %v614 = vpop.f32.mrb[0].mxu0
        %v615 = vadd.f32 %v521, %v614
        %v616 = vpop.f32.mrb[0].mxu0
        %617 = vmatprep.mubr.f32.mxu0 0.0
        %618 = vmatmul.mubr.f32.gmra.mrb[0].mxu0 %v528
        %v619 = vpop.f32.mrb[0].mxu0
        %v620 = vadd.f32 %v521, %v619
        %v621 = vpop.f32.mrb[0].mxu0
        %622 = vmatprep.mubr.f32.mxu0 0.0
        %623 = vmatmul.mubr.f32.gmra.mrb[0].mxu0 %v531
        %v624 = vpop.f32.mrb[0].mxu0
        %v625 = vadd.f32 %v521, %v624
        %v626 = vpop.f32.mrb[0].mxu0
        %627 = vmatprep.mubr.f32.mxu0 0.0
        %628 = vmatmul.mubr.f32.gmra.mrb[0].mxu0 %v534
        %v629 = vpop.f32.mrb[0].mxu0
        %v630 = vadd.f32 %v521, %v629
        %v631 = vpop.f32.mrb[0].mxu0
        %632 = vmatprep.mubr.f32.mxu0 0.0
        %633 = vmatmul.mubr.f32.gmra.mrb[0].mxu0 %v537
        %v634 = vpop.f32.mrb[0].mxu0
        %v635 = vadd.f32 %v521, %v634
        %v636 = vpop.f32.mrb[0].mxu0
        %637 = vmatprep.mubr.f32.mxu0 0.0
        %638 = vmatmul.mubr.f32.gmra.mrb[0].mxu0 %v540
        %v639 = vpop.f32.mrb[0].mxu0
        %v640 = vadd.f32 %v521, %v639
        %v641 = vpop.f32.mrb[0].mxu0
        %642 = vmatprep.mubr.f32.mxu0 0.0
        %643 = vmatmul.mubr.f32.gmra.mrb[0].mxu0 %v543
        %v644 = vpop.f32.mrb[0].mxu0
        %v645 = vadd.f32 %v521, %v644
        %v646 = vpop.f32.mrb[0].mxu0
        %647 = vmatprep.mubr.f32.mxu0 0.0
        %648 = vmatmul.mubr.f32.gmra.mrb[0].mxu0 %v546
        %v649 = vpop.f32.mrb[0].mxu0
        %v650 = vadd.f32 %v521, %v649
        %v651 = vpop.f32.mrb[0].mxu0
        %652 = vdwg.mxu0
        %v653 = vmax.f32 %v615, 0.0
        %v654 = vmax.f32 %v620, 0.0
        %v655 = vmax.f32 %v625, 0.0
        %v656 = vmax.f32 %v630, 0.0
        %v657 = vmax.f32 %v635, 0.0
        %v658 = vmax.f32 %v640, 0.0
        %v659 = vmax.f32 %v645, 0.0
        %v660 = vmax.f32 %v650, 0.0
        %v661 = vld [vmem:[#allocation2] sm:$0xff]
        %v662 = vld [vmem:[#allocation2 + $0x8] sm:$0xff]
        %v663 = vld [vmem:[#allocation2 + $0x10] sm:$0xff]
        %v664 = vld [vmem:[#allocation2 + $0x18] sm:$0xff]
        %v665 = vld [vmem:[#allocation2 + $0x20] sm:$0xff]
        %v666 = vld [vmem:[#allocation2 + $0x28] sm:$0xff]
        %v667 = vld [vmem:[#allocation2 + $0x30] sm:$0xff]
        %v668 = vld [vmem:[#allocation2 + $0x38] sm:$0xff]
        %v669 = vld [vmem:[#allocation2 + $0x40] sm:$0xff]
        %v670 = vld [vmem:[#allocation2 + $0x48] sm:$0xff]
        %v671 = vld [vmem:[#allocation2 + $0x50] sm:$0xff]
        %v672 = vld [vmem:[#allocation2 + $0x58] sm:$0xff]
        %v673 = vld [vmem:[#allocation2 + $0x60] sm:$0xff]
        %v674 = vld [vmem:[#allocation2 + $0x68] sm:$0xff]
        %v675 = vld [vmem:[#allocation2 + $0x70] sm:$0xff]
        %v676 = vld [vmem:[#allocation2 + $0x78] sm:$0xff]
        %v677 = vld [vmem:[#allocation2 + $0x80] sm:$0xff]
        %v678 = vld [vmem:[#allocation2 + $0x88] sm:$0xff]
        %v679 = vld [vmem:[#allocation2 + $0x90] sm:$0xff]
        %v680 = vld [vmem:[#allocation2 + $0x98] sm:$0xff]
        %v681 = vld [vmem:[#allocation2 + $0xa0] sm:$0xff]
        %v682 = vld [vmem:[#allocation2 + $0xa8] sm:$0xff]
        %v683 = vld [vmem:[#allocation2 + $0xb0] sm:$0xff]
        %v684 = vld [vmem:[#allocation2 + $0xb8] sm:$0xff]
        %v685 = vld [vmem:[#allocation2 + $0xc0] sm:$0xff]
        %v686 = vld [vmem:[#allocation2 + $0xc8] sm:$0xff]
        %v687 = vld [vmem:[#allocation2 + $0xd0] sm:$0xff]
        %v688 = vld [vmem:[#allocation2 + $0xd8] sm:$0xff]
        %v689 = vld [vmem:[#allocation2 + $0xe0] sm:$0xff]
        %v690 = vld [vmem:[#allocation2 + $0xe8] sm:$0xff]
        %v691 = vld [vmem:[#allocation2 + $0xf0] sm:$0xff]
        %v692 = vld [vmem:[#allocation2 + $0xf8] sm:$0xff]
        %v693 = vld [vmem:[#allocation2 + $0x100] sm:$0xff]
        %v694 = vld [vmem:[#allocation2 + $0x108] sm:$0xff]
        %v695 = vld [vmem:[#allocation2 + $0x110] sm:$0xff]
        %v696 = vld [vmem:[#allocation2 + $0x118] sm:$0xff]
        %v697 = vld [vmem:[#allocation2 + $0x120] sm:$0xff]
        %v698 = vld [vmem:[#allocation2 + $0x128] sm:$0xff]
        %v699 = vld [vmem:[#allocation2 + $0x130] sm:$0xff]
        %v700 = vld [vmem:[#allocation2 + $0x138] sm:$0xff]
        %v701 = vld [vmem:[#allocation2 + $0x140] sm:$0xff]
        %v702 = vld [vmem:[#allocation2 + $0x148] sm:$0xff]
        %v703 = vld [vmem:[#allocation2 + $0x150] sm:$0xff]
        %v704 = vld [vmem:[#allocation2 + $0x158] sm:$0xff]
        %v705 = vld [vmem:[#allocation2 + $0x160] sm:$0xff]
        %v706 = vld [vmem:[#allocation2 + $0x168] sm:$0xff]
        %v707 = vld [vmem:[#allocation2 + $0x170] sm:$0xff]
        %v708 = vld [vmem:[#allocation2 + $0x178] sm:$0xff]
        %v709 = vld [vmem:[#allocation2 + $0x180] sm:$0xff]
        %v710 = vld [vmem:[#allocation2 + $0x188] sm:$0xff]
        %v711 = vld [vmem:[#allocation2 + $0x190] sm:$0xff]
        %v712 = vld [vmem:[#allocation2 + $0x198] sm:$0xff]
        %v713 = vld [vmem:[#allocation2 + $0x1a0] sm:$0xff]
        %v714 = vld [vmem:[#allocation2 + $0x1a8] sm:$0xff]
        %v715 = vld [vmem:[#allocation2 + $0x1b0] sm:$0xff]
        %v716 = vld [vmem:[#allocation2 + $0x1b8] sm:$0xff]
        %v717 = vld [vmem:[#allocation2 + $0x1c0] sm:$0xff]
        %v718 = vld [vmem:[#allocation2 + $0x1c8] sm:$0xff]
        %v719 = vld [vmem:[#allocation2 + $0x1d0] sm:$0xff]
        %v720 = vld [vmem:[#allocation2 + $0x1d8] sm:$0xff]
        %v721 = vld [vmem:[#allocation2 + $0x1e0] sm:$0xff]
        %v722 = vld [vmem:[#allocation2 + $0x1e8] sm:$0xff]
        %v723 = vld [vmem:[#allocation2 + $0x1f0] sm:$0xff]
        %v724 = vld [vmem:[#allocation2 + $0x1f8] sm:$0xff]
        %v725 = vld [vmem:[#allocation2 + $0x200] sm:$0xff]
        %v726 = vld [vmem:[#allocation2 + $0x208] sm:$0xff]
        %v727 = vld [vmem:[#allocation2 + $0x210] sm:$0xff]
        %v728 = vld [vmem:[#allocation2 + $0x218] sm:$0xff]
        %v729 = vld [vmem:[#allocation2 + $0x220] sm:$0xff]
        %v730 = vld [vmem:[#allocation2 + $0x228] sm:$0xff]
        %v731 = vld [vmem:[#allocation2 + $0x230] sm:$0xff]
        %v732 = vld [vmem:[#allocation2 + $0x238] sm:$0xff]
        %v733 = vld [vmem:[#allocation2 + $0x240] sm:$0xff]
        %v734 = vld [vmem:[#allocation2 + $0x248] sm:$0xff]
        %v735 = vld [vmem:[#allocation2 + $0x250] sm:$0xff]
        %v736 = vld [vmem:[#allocation2 + $0x258] sm:$0xff]
        %v737 = vld [vmem:[#allocation2 + $0x260] sm:$0xff]
        %v738 = vld [vmem:[#allocation2 + $0x268] sm:$0xff]
        %v739 = vld [vmem:[#allocation2 + $0x270] sm:$0xff]
        %v740 = vld [vmem:[#allocation2 + $0x278] sm:$0xff]
        %v741 = vld [vmem:[#allocation2 + $0x280] sm:$0xff]
        %v742 = vld [vmem:[#allocation2 + $0x288] sm:$0xff]
        %v743 = vld [vmem:[#allocation2 + $0x290] sm:$0xff]
        %v744 = vld [vmem:[#allocation2 + $0x298] sm:$0xff]
        %v745 = vld [vmem:[#allocation2 + $0x2a0] sm:$0xff]
        %v746 = vld [vmem:[#allocation2 + $0x2a8] sm:$0xff]
        %v747 = vld [vmem:[#allocation2 + $0x2b0] sm:$0xff]
        %v748 = vld [vmem:[#allocation2 + $0x2b8] sm:$0xff]
        %v749 = vld [vmem:[#allocation2 + $0x2c0] sm:$0xff]
        %v750 = vld [vmem:[#allocation2 + $0x2c8] sm:$0xff]
        %v751 = vld [vmem:[#allocation2 + $0x2d0] sm:$0xff]
        %v752 = vld [vmem:[#allocation2 + $0x2d8] sm:$0xff]
        %v753 = vld [vmem:[#allocation2 + $0x2e0] sm:$0xff]
        %v754 = vld [vmem:[#allocation2 + $0x2e8] sm:$0xff]
        %v755 = vld [vmem:[#allocation2 + $0x2f0] sm:$0xff]
        %v756 = vld [vmem:[#allocation2 + $0x2f8] sm:$0xff]
        %v757 = vld [vmem:[#allocation2 + $0x300] sm:$0xff]
        %v758 = vld [vmem:[#allocation2 + $0x308] sm:$0xff]
        %v759 = vld [vmem:[#allocation2 + $0x310] sm:$0xff]
        %v760 = vld [vmem:[#allocation2 + $0x318] sm:$0xff]
        %v761 = vld [vmem:[#allocation2 + $0x320] sm:$0xff]
        %v762 = vld [vmem:[#allocation2 + $0x328] sm:$0xff]
        %v763 = vld [vmem:[#allocation2 + $0x330] sm:$0xff]
        %v764 = vld [vmem:[#allocation2 + $0x338] sm:$0xff]
        %v765 = vld [vmem:[#allocation2 + $0x340] sm:$0xff]
        %v766 = vld [vmem:[#allocation2 + $0x348] sm:$0xff]
        %v767 = vld [vmem:[#allocation2 + $0x350] sm:$0xff]
        %v768 = vld [vmem:[#allocation2 + $0x358] sm:$0xff]
        %v769 = vld [vmem:[#allocation2 + $0x360] sm:$0xff]
        %v770 = vld [vmem:[#allocation2 + $0x368] sm:$0xff]
        %v771 = vld [vmem:[#allocation2 + $0x370] sm:$0xff]
        %v772 = vld [vmem:[#allocation2 + $0x378] sm:$0xff]
        %v773 = vld [vmem:[#allocation2 + $0x380] sm:$0xff]
        %v774 = vld [vmem:[#allocation2 + $0x388] sm:$0xff]
        %v775 = vld [vmem:[#allocation2 + $0x390] sm:$0xff]
        %v776 = vld [vmem:[#allocation2 + $0x398] sm:$0xff]
        %v777 = vld [vmem:[#allocation2 + $0x3a0] sm:$0xff]
        %v778 = vld [vmem:[#allocation2 + $0x3a8] sm:$0xff]
        %v779 = vld [vmem:[#allocation2 + $0x3b0] sm:$0xff]
        %v780 = vld [vmem:[#allocation2 + $0x3b8] sm:$0xff]
        %v781 = vld [vmem:[#allocation2 + $0x3c0] sm:$0xff]
        %v782 = vld [vmem:[#allocation2 + $0x3c8] sm:$0xff]
        %v783 = vld [vmem:[#allocation2 + $0x3d0] sm:$0xff]
        %v784 = vld [vmem:[#allocation2 + $0x3d8] sm:$0xff]
        %v785 = vld [vmem:[#allocation2 + $0x3e0] sm:$0xff]
        %v786 = vld [vmem:[#allocation2 + $0x3e8] sm:$0xff]
        %v787 = vld [vmem:[#allocation2 + $0x3f0] sm:$0xff]
        %v788 = vld [vmem:[#allocation2 + $0x3f8] sm:$0xff]
        %v789 = vld [vmem:[%s6] sm:$0xff]
        %v791 = vlaneseq
        %v792 = vshrl.u32 %v791, 7
        %v793 = vsub.s32 0, %v792
        %v794 = vrot.slane %v789, %v793
        %v795 = vlaneseq
        %v796 = vshrl.u32 %v795, 7
        %v797 = vsub.s32 1, %v796
        %v798 = vrot.slane %v789, %v797
        %v799 = vlaneseq
        %v800 = vshrl.u32 %v799, 7
        %v801 = vsub.s32 2, %v800
        %v802 = vrot.slane %v789, %v801
        %v803 = vlaneseq
        %v804 = vshrl.u32 %v803, 7
        %v805 = vsub.s32 3, %v804
        %v806 = vrot.slane %v789, %v805
        %v807 = vlaneseq
        %v808 = vshrl.u32 %v807, 7
        %v809 = vsub.s32 4, %v808
        %v810 = vrot.slane %v789, %v809
        %v811 = vlaneseq
        %v812 = vshrl.u32 %v811, 7
        %v813 = vsub.s32 5, %v812
        %v814 = vrot.slane %v789, %v813
        %v815 = vlaneseq
        %v816 = vshrl.u32 %v815, 7
        %v817 = vsub.s32 6, %v816
        %v818 = vrot.slane %v789, %v817
        %v819 = vlaneseq
        %v820 = vshrl.u32 %v819, 7
        %v821 = vsub.s32 7, %v820
        %v822 = vrot.slane %v789, %v821
        %831 = vmatprep.subr.mxu0 %v662
        %832 = vmatpush1.msra.mxu0 %v661
        %833 = vmatprep.subr.mxu0 %v670
        %834 = vmatpush1.msra.mxu0 %v669
        %835 = vmatprep.subr.mxu0 %v678
        %836 = vmatpush1.msra.mxu0 %v677
        %837 = vmatprep.subr.mxu0 %v686
        %838 = vmatpush1.msra.mxu0 %v685
        %839 = vmatprep.subr.mxu0 %v694
        %840 = vmatpush1.msra.mxu0 %v693
        %841 = vmatprep.subr.mxu0 %v702
        %842 = vmatpush1.msra.mxu0 %v701
        %843 = vmatprep.subr.mxu0 %v710
        %844 = vmatpush1.msra.mxu0 %v709
        %845 = vmatprep.subr.mxu0 %v718
        %846 = vmatpush1.msra.mxu0 %v717
        %847 = vmatprep.subr.mxu0 %v726
        %848 = vmatpush1.msra.mxu0 %v725
        %849 = vmatprep.subr.mxu0 %v734
        %850 = vmatpush1.msra.mxu0 %v733
        %851 = vmatprep.subr.mxu0 %v742
        %852 = vmatpush1.msra.mxu0 %v741
        %853 = vmatprep.subr.mxu0 %v750
        %854 = vmatpush1.msra.mxu0 %v749
        %855 = vmatprep.subr.mxu0 %v758
        %856 = vmatpush1.msra.mxu0 %v757
        %857 = vmatprep.subr.mxu0 %v766
        %858 = vmatpush1.msra.mxu0 %v765
        %859 = vmatprep.subr.mxu0 %v774
        %860 = vmatpush1.msra.mxu0 %v773
        %861 = vmatprep.subr.mxu0 %v782
        %862 = vmatpush1.msra.mxu0 %v781
        %863 = vmatprep.subr.mxu0 0.0
        %864 = vmatpush1.msra.mxu0 0.0
        %865 = vmatprep.subr.mxu0 0.0
        %866 = vmatpush1.msra.mxu0 0.0
        %867 = vmatprep.subr.mxu0 0.0
        %868 = vmatpush1.msra.mxu0 0.0
        %869 = vmatprep.subr.mxu0 0.0
        %870 = vmatpush1.msra.mxu0 0.0
        %871 = vmatprep.subr.mxu0 0.0
        %872 = vmatpush1.msra.mxu0 0.0
        %873 = vmatprep.subr.mxu0 0.0
        %874 = vmatpush1.msra.mxu0 0.0
        %875 = vmatprep.subr.mxu0 0.0
        %876 = vmatpush1.msra.mxu0 0.0
        %877 = vmatprep.subr.mxu0 0.0
        %878 = vmatpush1.msra.mxu0 0.0
        %879 = vmatprep.subr.mxu0 0.0
        %880 = vmatpush1.msra.mxu0 0.0
        %881 = vmatprep.subr.mxu0 0.0
        %882 = vmatpush1.msra.mxu0 0.0
        %883 = vmatprep.subr.mxu0 0.0
        %884 = vmatpush1.msra.mxu0 0.0
        %885 = vmatprep.subr.mxu0 0.0
        %886 = vmatpush1.msra.mxu0 0.0
        %887 = vmatprep.subr.mxu0 0.0
        %888 = vmatpush1.msra.mxu0 0.0
        %889 = vmatprep.subr.mxu0 0.0
        %890 = vmatpush1.msra.mxu0 0.0
        %891 = vmatprep.subr.mxu0 0.0
        %892 = vmatpush1.msra.mxu0 0.0
        %893 = vmatprep.subr.mxu0 0.0
        %894 = vmatpush1.msra.mxu0 0.0
        %895 = vmatprep.mubr.f32.mxu0 0.0
        %896 = vmatmul.mubr.f32.gmra.mrb[0].mxu0 %v653
        %v897 = vpop.f32.mrb[0].mxu0
        %v898 = vadd.f32 %v794, %v897
        %v899 = vpop.f32.mrb[0].mxu0
        %v900 = vadd.f32 %v798, %v899
        %901 = vmatprep.mubr.f32.mxu0 0.0
        %902 = vmatmul.mubr.f32.gmra.mrb[0].mxu0 %v654
        %v903 = vpop.f32.mrb[0].mxu0
        %v904 = vadd.f32 %v794, %v903
        %v905 = vpop.f32.mrb[0].mxu0
        %v906 = vadd.f32 %v798, %v905
        %907 = vmatprep.mubr.f32.mxu0 0.0
        %908 = vmatmul.mubr.f32.gmra.mrb[0].mxu0 %v655
        %v909 = vpop.f32.mrb[0].mxu0
        %v910 = vadd.f32 %v794, %v909
        %v911 = vpop.f32.mrb[0].mxu0
        %v912 = vadd.f32 %v798, %v911
        %913 = vmatprep.mubr.f32.mxu0 0.0
        %914 = vmatmul.mubr.f32.gmra.mrb[0].mxu0 %v656
        %v915 = vpop.f32.mrb[0].mxu0
        %v916 = vadd.f32 %v794, %v915
        %v917 = vpop.f32.mrb[0].mxu0
        %v918 = vadd.f32 %v798, %v917
        %919 = vmatprep.mubr.f32.mxu0 0.0
        %920 = vmatmul.mubr.f32.gmra.mrb[0].mxu0 %v657
        %v921 = vpop.f32.mrb[0].mxu0
        %v922 = vadd.f32 %v794, %v921
        %v923 = vpop.f32.mrb[0].mxu0
        %v924 = vadd.f32 %v798, %v923
        %925 = vmatprep.mubr.f32.mxu0 0.0
        %926 = vmatmul.mubr.f32.gmra.mrb[0].mxu0 %v658
        %v927 = vpop.f32.mrb[0].mxu0
        %v928 = vadd.f32 %v794, %v927
        %v929 = vpop.f32.mrb[0].mxu0
        %v930 = vadd.f32 %v798, %v929
        %931 = vmatprep.mubr.f32.mxu0 0.0
        %932 = vmatmul.mubr.f32.gmra.mrb[0].mxu0 %v659
        %v933 = vpop.f32.mrb[0].mxu0
        %v934 = vadd.f32 %v794, %v933
        %v935 = vpop.f32.mrb[0].mxu0
        %v936 = vadd.f32 %v798, %v935
        %937 = vmatprep.mubr.f32.mxu0 0.0
        %938 = vmatmul.mubr.f32.gmra.mrb[0].mxu0 %v660
        %v939 = vpop.f32.mrb[0].mxu0
        %v940 = vadd.f32 %v794, %v939
        %v941 = vpop.f32.mrb[0].mxu0
        %v942 = vadd.f32 %v798, %v941
        %943 = vdwg.mxu0
        %944 = vmatprep.subr.mxu0 %v664
        %945 = vmatpush1.msra.mxu0 %v663
        %946 = vmatprep.subr.mxu0 %v672
        %947 = vmatpush1.msra.mxu0 %v671
        %948 = vmatprep.subr.mxu0 %v680
        %949 = vmatpush1.msra.mxu0 %v679
        %950 = vmatprep.subr.mxu0 %v688
        %951 = vmatpush1.msra.mxu0 %v687
        %952 = vmatprep.subr.mxu0 %v696
        %953 = vmatpush1.msra.mxu0 %v695
        %954 = vmatprep.subr.mxu0 %v704
        %955 = vmatpush1.msra.mxu0 %v703
        %956 = vmatprep.subr.mxu0 %v712
        %957 = vmatpush1.msra.mxu0 %v711
        %958 = vmatprep.subr.mxu0 %v720
        %959 = vmatpush1.msra.mxu0 %v719
        %960 = vmatprep.subr.mxu0 %v728
        %961 = vmatpush1.msra.mxu0 %v727
        %962 = vmatprep.subr.mxu0 %v736
        %963 = vmatpush1.msra.mxu0 %v735
        %964 = vmatprep.subr.mxu0 %v744
        %965 = vmatpush1.msra.mxu0 %v743
        %966 = vmatprep.subr.mxu0 %v752
        %967 = vmatpush1.msra.mxu0 %v751
        %968 = vmatprep.subr.mxu0 %v760
        %969 = vmatpush1.msra.mxu0 %v759
        %970 = vmatprep.subr.mxu0 %v768
        %971 = vmatpush1.msra.mxu0 %v767
        %972 = vmatprep.subr.mxu0 %v776
        %973 = vmatpush1.msra.mxu0 %v775
        %974 = vmatprep.subr.mxu0 %v784
        %975 = vmatpush1.msra.mxu0 %v783
        %976 = vmatprep.subr.mxu0 0.0
        %977 = vmatpush1.msra.mxu0 0.0
        %978 = vmatprep.subr.mxu0 0.0
        %979 = vmatpush1.msra.mxu0 0.0
        %980 = vmatprep.subr.mxu0 0.0
        %981 = vmatpush1.msra.mxu0 0.0
        %982 = vmatprep.subr.mxu0 0.0
        %983 = vmatpush1.msra.mxu0 0.0
        %984 = vmatprep.subr.mxu0 0.0
        %985 = vmatpush1.msra.mxu0 0.0
        %986 = vmatprep.subr.mxu0 0.0
        %987 = vmatpush1.msra.mxu0 0.0
        %988 = vmatprep.subr.mxu0 0.0
        %989 = vmatpush1.msra.mxu0 0.0
        %990 = vmatprep.subr.mxu0 0.0
        %991 = vmatpush1.msra.mxu0 0.0
        %992 = vmatprep.subr.mxu0 0.0
        %993 = vmatpush1.msra.mxu0 0.0
        %994 = vmatprep.subr.mxu0 0.0
        %995 = vmatpush1.msra.mxu0 0.0
        %996 = vmatprep.subr.mxu0 0.0
        %997 = vmatpush1.msra.mxu0 0.0
        %998 = vmatprep.subr.mxu0 0.0
        %999 = vmatpush1.msra.mxu0 0.0
        %1000 = vmatprep.subr.mxu0 0.0
        %1001 = vmatpush1.msra.mxu0 0.0
        %1002 = vmatprep.subr.mxu0 0.0
        %1003 = vmatpush1.msra.mxu0 0.0
        %1004 = vmatprep.subr.mxu0 0.0
        %1005 = vmatpush1.msra.mxu0 0.0
        %1006 = vmatprep.subr.mxu0 0.0
        %1007 = vmatpush1.msra.mxu0 0.0
        %1008 = vmatprep.mubr.f32.mxu0 0.0
        %1009 = vmatmul.mubr.f32.gmra.mrb[0].mxu0 %v653
        %v1010 = vpop.f32.mrb[0].mxu0
        %v1011 = vadd.f32 %v802, %v1010
        %v1012 = vpop.f32.mrb[0].mxu0
        %v1013 = vadd.f32 %v806, %v1012
        %1014 = vmatprep.mubr.f32.mxu0 0.0
        %1015 = vmatmul.mubr.f32.gmra.mrb[0].mxu0 %v654
        %v1016 = vpop.f32.mrb[0].mxu0
        %v1017 = vadd.f32 %v802, %v1016
        %v1018 = vpop.f32.mrb[0].mxu0
        %v1019 = vadd.f32 %v806, %v1018
        %1020 = vmatprep.mubr.f32.mxu0 0.0
        %1021 = vmatmul.mubr.f32.gmra.mrb[0].mxu0 %v655
        %v1022 = vpop.f32.mrb[0].mxu0
        %v1023 = vadd.f32 %v802, %v1022
        %v1024 = vpop.f32.mrb[0].mxu0
        %v1025 = vadd.f32 %v806, %v1024
        %1026 = vmatprep.mubr.f32.mxu0 0.0
        %1027 = vmatmul.mubr.f32.gmra.mrb[0].mxu0 %v656
        %v1028 = vpop.f32.mrb[0].mxu0
        %v1029 = vadd.f32 %v802, %v1028
        %v1030 = vpop.f32.mrb[0].mxu0
        %v1031 = vadd.f32 %v806, %v1030
        %1032 = vmatprep.mubr.f32.mxu0 0.0
        %1033 = vmatmul.mubr.f32.gmra.mrb[0].mxu0 %v657
        %v1034 = vpop.f32.mrb[0].mxu0
        %v1035 = vadd.f32 %v802, %v1034
        %v1036 = vpop.f32.mrb[0].mxu0
        %v1037 = vadd.f32 %v806, %v1036
        %1038 = vmatprep.mubr.f32.mxu0 0.0
        %1039 = vmatmul.mubr.f32.gmra.mrb[0].mxu0 %v658
        %v1040 = vpop.f32.mrb[0].mxu0
        %v1041 = vadd.f32 %v802, %v1040
        %v1042 = vpop.f32.mrb[0].mxu0
        %v1043 = vadd.f32 %v806, %v1042
        %1044 = vmatprep.mubr.f32.mxu0 0.0
        %1045 = vmatmul.mubr.f32.gmra.mrb[0].mxu0 %v659
        %v1046 = vpop.f32.mrb[0].mxu0
        %v1047 = vadd.f32 %v802, %v1046
        %v1048 = vpop.f32.mrb[0].mxu0
        %v1049 = vadd.f32 %v806, %v1048
        %1050 = vmatprep.mubr.f32.mxu0 0.0
        %1051 = vmatmul.mubr.f32.gmra.mrb[0].mxu0 %v660
        %v1052 = vpop.f32.mrb[0].mxu0
        %v1053 = vadd.f32 %v802, %v1052
        %v1054 = vpop.f32.mrb[0].mxu0
        %v1055 = vadd.f32 %v806, %v1054
        %1056 = vdwg.mxu0
        %1057 = vmatprep.subr.mxu0 %v666
        %1058 = vmatpush1.msra.mxu0 %v665
        %1059 = vmatprep.subr.mxu0 %v674
        %1060 = vmatpush1.msra.mxu0 %v673
        %1061 = vmatprep.subr.mxu0 %v682
        %1062 = vmatpush1.msra.mxu0 %v681
        %1063 = vmatprep.subr.mxu0 %v690
        %1064 = vmatpush1.msra.mxu0 %v689
        %1065 = vmatprep.subr.mxu0 %v698
        %1066 = vmatpush1.msra.mxu0 %v697
        %1067 = vmatprep.subr.mxu0 %v706
        %1068 = vmatpush1.msra.mxu0 %v705
        %1069 = vmatprep.subr.mxu0 %v714
        %1070 = vmatpush1.msra.mxu0 %v713
        %1071 = vmatprep.subr.mxu0 %v722
        %1072 = vmatpush1.msra.mxu0 %v721
        %1073 = vmatprep.subr.mxu0 %v730
        %1074 = vmatpush1.msra.mxu0 %v729
        %1075 = vmatprep.subr.mxu0 %v738
        %1076 = vmatpush1.msra.mxu0 %v737
        %1077 = vmatprep.subr.mxu0 %v746
        %1078 = vmatpush1.msra.mxu0 %v745
        %1079 = vmatprep.subr.mxu0 %v754
        %1080 = vmatpush1.msra.mxu0 %v753
        %1081 = vmatprep.subr.mxu0 %v762
        %1082 = vmatpush1.msra.mxu0 %v761
        %1083 = vmatprep.subr.mxu0 %v770
        %1084 = vmatpush1.msra.mxu0 %v769
        %1085 = vmatprep.subr.mxu0 %v778
        %1086 = vmatpush1.msra.mxu0 %v777
        %1087 = vmatprep.subr.mxu0 %v786
        %1088 = vmatpush1.msra.mxu0 %v785
        %1089 = vmatprep.subr.mxu0 0.0
        %1090 = vmatpush1.msra.mxu0 0.0
        %1091 = vmatprep.subr.mxu0 0.0
        %1092 = vmatpush1.msra.mxu0 0.0
        %1093 = vmatprep.subr.mxu0 0.0
        %1094 = vmatpush1.msra.mxu0 0.0
        %1095 = vmatprep.subr.mxu0 0.0
        %1096 = vmatpush1.msra.mxu0 0.0
        %1097 = vmatprep.subr.mxu0 0.0
        %1098 = vmatpush1.msra.mxu0 0.0
        %1099 = vmatprep.subr.mxu0 0.0
        %1100 = vmatpush1.msra.mxu0 0.0
        %1101 = vmatprep.subr.mxu0 0.0
        %1102 = vmatpush1.msra.mxu0 0.0
        %1103 = vmatprep.subr.mxu0 0.0
        %1104 = vmatpush1.msra.mxu0 0.0
        %1105 = vmatprep.subr.mxu0 0.0
        %1106 = vmatpush1.msra.mxu0 0.0
        %1107 = vmatprep.subr.mxu0 0.0
        %1108 = vmatpush1.msra.mxu0 0.0
        %1109 = vmatprep.subr.mxu0 0.0
        %1110 = vmatpush1.msra.mxu0 0.0
        %1111 = vmatprep.subr.mxu0 0.0
        %1112 = vmatpush1.msra.mxu0 0.0
        %1113 = vmatprep.subr.mxu0 0.0
        %1114 = vmatpush1.msra.mxu0 0.0
        %1115 = vmatprep.subr.mxu0 0.0
        %1116 = vmatpush1.msra.mxu0 0.0
        %1117 = vmatprep.subr.mxu0 0.0
        %1118 = vmatpush1.msra.mxu0 0.0
        %1119 = vmatprep.subr.mxu0 0.0
        %1120 = vmatpush1.msra.mxu0 0.0
        %1121 = vmatprep.mubr.f32.mxu0 0.0
        %1122 = vmatmul.mubr.f32.gmra.mrb[0].mxu0 %v653
        %v1123 = vpop.f32.mrb[0].mxu0
        %v1124 = vadd.f32 %v810, %v1123
        %v1125 = vpop.f32.mrb[0].mxu0
        %v1126 = vadd.f32 %v814, %v1125
        %1127 = vmatprep.mubr.f32.mxu0 0.0
        %1128 = vmatmul.mubr.f32.gmra.mrb[0].mxu0 %v654
        %v1129 = vpop.f32.mrb[0].mxu0
        %v1130 = vadd.f32 %v810, %v1129
        %v1131 = vpop.f32.mrb[0].mxu0
        %v1132 = vadd.f32 %v814, %v1131
        %1133 = vmatprep.mubr.f32.mxu0 0.0
        %1134 = vmatmul.mubr.f32.gmra.mrb[0].mxu0 %v655
        %v1135 = vpop.f32.mrb[0].mxu0
        %v1136 = vadd.f32 %v810, %v1135
        %v1137 = vpop.f32.mrb[0].mxu0
        %v1138 = vadd.f32 %v814, %v1137
        %1139 = vmatprep.mubr.f32.mxu0 0.0
        %1140 = vmatmul.mubr.f32.gmra.mrb[0].mxu0 %v656
        %v1141 = vpop.f32.mrb[0].mxu0
        %v1142 = vadd.f32 %v810, %v1141
        %v1143 = vpop.f32.mrb[0].mxu0
        %v1144 = vadd.f32 %v814, %v1143
        %1145 = vmatprep.mubr.f32.mxu0 0.0
        %1146 = vmatmul.mubr.f32.gmra.mrb[0].mxu0 %v657
        %v1147 = vpop.f32.mrb[0].mxu0
        %v1148 = vadd.f32 %v810, %v1147
        %v1149 = vpop.f32.mrb[0].mxu0
        %v1150 = vadd.f32 %v814, %v1149
        %1151 = vmatprep.mubr.f32.mxu0 0.0
        %1152 = vmatmul.mubr.f32.gmra.mrb[0].mxu0 %v658
        %v1153 = vpop.f32.mrb[0].mxu0
        %v1154 = vadd.f32 %v810, %v1153
        %v1155 = vpop.f32.mrb[0].mxu0
        %v1156 = vadd.f32 %v814, %v1155
        %1157 = vmatprep.mubr.f32.mxu0 0.0
        %1158 = vmatmul.mubr.f32.gmra.mrb[0].mxu0 %v659
        %v1159 = vpop.f32.mrb[0].mxu0
        %v1160 = vadd.f32 %v810, %v1159
        %v1161 = vpop.f32.mrb[0].mxu0
        %v1162 = vadd.f32 %v814, %v1161
        %1163 = vmatprep.mubr.f32.mxu0 0.0
        %1164 = vmatmul.mubr.f32.gmra.mrb[0].mxu0 %v660
        %v1165 = vpop.f32.mrb[0].mxu0
        %v1166 = vadd.f32 %v810, %v1165
        %v1167 = vpop.f32.mrb[0].mxu0
        %v1168 = vadd.f32 %v814, %v1167
        %1169 = vdwg.mxu0
        %1170 = vmatprep.subr.mxu0 %v668
        %1171 = vmatpush1.msra.mxu0 %v667
        %1172 = vmatprep.subr.mxu0 %v676
        %1173 = vmatpush1.msra.mxu0 %v675
        %1174 = vmatprep.subr.mxu0 %v684
        %1175 = vmatpush1.msra.mxu0 %v683
        %1176 = vmatprep.subr.mxu0 %v692
        %1177 = vmatpush1.msra.mxu0 %v691
        %1178 = vmatprep.subr.mxu0 %v700
        %1179 = vmatpush1.msra.mxu0 %v699
        %1180 = vmatprep.subr.mxu0 %v708
        %1181 = vmatpush1.msra.mxu0 %v707
        %1182 = vmatprep.subr.mxu0 %v716
        %1183 = vmatpush1.msra.mxu0 %v715
        %1184 = vmatprep.subr.mxu0 %v724
        %1185 = vmatpush1.msra.mxu0 %v723
        %1186 = vmatprep.subr.mxu0 %v732
        %1187 = vmatpush1.msra.mxu0 %v731
        %1188 = vmatprep.subr.mxu0 %v740
        %1189 = vmatpush1.msra.mxu0 %v739
        %1190 = vmatprep.subr.mxu0 %v748
        %1191 = vmatpush1.msra.mxu0 %v747
        %1192 = vmatprep.subr.mxu0 %v756
        %1193 = vmatpush1.msra.mxu0 %v755
        %1194 = vmatprep.subr.mxu0 %v764
        %1195 = vmatpush1.msra.mxu0 %v763
        %1196 = vmatprep.subr.mxu0 %v772
        %1197 = vmatpush1.msra.mxu0 %v771
        %1198 = vmatprep.subr.mxu0 %v780
        %1199 = vmatpush1.msra.mxu0 %v779
        %1200 = vmatprep.subr.mxu0 %v788
        %1201 = vmatpush1.msra.mxu0 %v787
        %1202 = vmatprep.subr.mxu0 0.0
        %1203 = vmatpush1.msra.mxu0 0.0
        %1204 = vmatprep.subr.mxu0 0.0
        %1205 = vmatpush1.msra.mxu0 0.0
        %1206 = vmatprep.subr.mxu0 0.0
        %1207 = vmatpush1.msra.mxu0 0.0
        %1208 = vmatprep.subr.mxu0 0.0
        %1209 = vmatpush1.msra.mxu0 0.0
        %1210 = vmatprep.subr.mxu0 0.0
        %1211 = vmatpush1.msra.mxu0 0.0
        %1212 = vmatprep.subr.mxu0 0.0
        %1213 = vmatpush1.msra.mxu0 0.0
        %1214 = vmatprep.subr.mxu0 0.0
        %1215 = vmatpush1.msra.mxu0 0.0
        %1216 = vmatprep.subr.mxu0 0.0
        %1217 = vmatpush1.msra.mxu0 0.0
        %1218 = vmatprep.subr.mxu0 0.0
        %1219 = vmatpush1.msra.mxu0 0.0
        %1220 = vmatprep.subr.mxu0 0.0
        %1221 = vmatpush1.msra.mxu0 0.0
        %1222 = vmatprep.subr.mxu0 0.0
        %1223 = vmatpush1.msra.mxu0 0.0
        %1224 = vmatprep.subr.mxu0 0.0
        %1225 = vmatpush1.msra.mxu0 0.0
        %1226 = vmatprep.subr.mxu0 0.0
        %1227 = vmatpush1.msra.mxu0 0.0
        %1228 = vmatprep.subr.mxu0 0.0
        %1229 = vmatpush1.msra.mxu0 0.0
        %1230 = vmatprep.subr.mxu0 0.0
        %1231 = vmatpush1.msra.mxu0 0.0
        %1232 = vmatprep.subr.mxu0 0.0
        %1233 = vmatpush1.msra.mxu0 0.0
        %1234 = vmatprep.mubr.f32.mxu0 0.0
        %1235 = vmatmul.mubr.f32.gmra.mrb[0].mxu0 %v653
        %v1236 = vpop.f32.mrb[0].mxu0
        %v1237 = vadd.f32 %v818, %v1236
        %v1238 = vpop.f32.mrb[0].mxu0
        %v1239 = vadd.f32 %v822, %v1238
        %1240 = vmatprep.mubr.f32.mxu0 0.0
        %1241 = vmatmul.mubr.f32.gmra.mrb[0].mxu0 %v654
        %v1242 = vpop.f32.mrb[0].mxu0
        %v1243 = vadd.f32 %v818, %v1242
        %v1244 = vpop.f32.mrb[0].mxu0
        %v1245 = vadd.f32 %v822, %v1244
        %1246 = vmatprep.mubr.f32.mxu0 0.0
        %1247 = vmatmul.mubr.f32.gmra.mrb[0].mxu0 %v655
        %v1248 = vpop.f32.mrb[0].mxu0
        %v1249 = vadd.f32 %v818, %v1248
        %v1250 = vpop.f32.mrb[0].mxu0
        %v1251 = vadd.f32 %v822, %v1250
        %1252 = vmatprep.mubr.f32.mxu0 0.0
        %1253 = vmatmul.mubr.f32.gmra.mrb[0].mxu0 %v656
        %v1254 = vpop.f32.mrb[0].mxu0
        %v1255 = vadd.f32 %v818, %v1254
        %v1256 = vpop.f32.mrb[0].mxu0
        %v1257 = vadd.f32 %v822, %v1256
        %1258 = vmatprep.mubr.f32.mxu0 0.0
        %1259 = vmatmul.mubr.f32.gmra.mrb[0].mxu0 %v657
        %v1260 = vpop.f32.mrb[0].mxu0
        %v1261 = vadd.f32 %v818, %v1260
        %v1262 = vpop.f32.mrb[0].mxu0
        %v1263 = vadd.f32 %v822, %v1262
        %1264 = vmatprep.mubr.f32.mxu0 0.0
        %1265 = vmatmul.mubr.f32.gmra.mrb[0].mxu0 %v658
        %v1266 = vpop.f32.mrb[0].mxu0
        %v1267 = vadd.f32 %v818, %v1266
        %v1268 = vpop.f32.mrb[0].mxu0
        %v1269 = vadd.f32 %v822, %v1268
        %1270 = vmatprep.mubr.f32.mxu0 0.0
        %1271 = vmatmul.mubr.f32.gmra.mrb[0].mxu0 %v659
        %v1272 = vpop.f32.mrb[0].mxu0
        %v1273 = vadd.f32 %v818, %v1272
        %v1274 = vpop.f32.mrb[0].mxu0
        %v1275 = vadd.f32 %v822, %v1274
        %1276 = vmatprep.mubr.f32.mxu0 0.0
        %1277 = vmatmul.mubr.f32.gmra.mrb[0].mxu0 %v660
        %v1278 = vpop.f32.mrb[0].mxu0
        %v1279 = vadd.f32 %v818, %v1278
        %v1280 = vpop.f32.mrb[0].mxu0
        %v1281 = vadd.f32 %v822, %v1280
        %1282 = vdwg.mxu0
        %v1283 = vmax.f32 %v898, %v904
        %v1284 = vmax.f32 %v1283, %v910
        %v1285 = vmax.f32 %v1284, %v916
        %v1286 = vmax.f32 %v1285, %v922
        %v1287 = vmax.f32 %v1286, %v928
        %v1288 = vmax.f32 %v1287, %v934
        %v1289 = vmax.f32 %v1288, %v940
        %v1290 = vrot.slane %v1289, 4
        %v1291 = vmax.f32 %v1289, %v1290
        %v1292 = vrot.slane %v1291, 2
        %v1293 = vmax.f32 %v1291, %v1292
        %v1294 = vrot.slane %v1293, 1
        %v1295 = vmax.f32 %v1293, %v1294
        %v1296 = vmax.f32 %v900, %v906
        %v1297 = vmax.f32 %v1296, %v912
        %v1298 = vmax.f32 %v1297, %v918
        %v1299 = vmax.f32 %v1298, %v924
        %v1300 = vmax.f32 %v1299, %v930
        %v1301 = vmax.f32 %v1300, %v936
        %v1302 = vmax.f32 %v1301, %v942
        %v1303 = vrot.slane %v1302, 4
        %v1304 = vmax.f32 %v1302, %v1303
        %v1305 = vrot.slane %v1304, 2
        %v1306 = vmax.f32 %v1304, %v1305
        %v1307 = vrot.slane %v1306, 1
        %v1308 = vmax.f32 %v1306, %v1307
        %v1309 = vmax.f32 %v1011, %v1017
        %v1310 = vmax.f32 %v1309, %v1023
        %v1311 = vmax.f32 %v1310, %v1029
        %v1312 = vmax.f32 %v1311, %v1035
        %v1313 = vmax.f32 %v1312, %v1041
        %v1314 = vmax.f32 %v1313, %v1047
        %v1315 = vmax.f32 %v1314, %v1053
        %v1316 = vrot.slane %v1315, 4
        %v1317 = vmax.f32 %v1315, %v1316
        %v1318 = vrot.slane %v1317, 2
        %v1319 = vmax.f32 %v1317, %v1318
        %v1320 = vrot.slane %v1319, 1
        %v1321 = vmax.f32 %v1319, %v1320
        %v1322 = vmax.f32 %v1013, %v1019
        %v1323 = vmax.f32 %v1322, %v1025
        %v1324 = vmax.f32 %v1323, %v1031
        %v1325 = vmax.f32 %v1324, %v1037
        %v1326 = vmax.f32 %v1325, %v1043
        %v1327 = vmax.f32 %v1326, %v1049
        %v1328 = vmax.f32 %v1327, %v1055
        %v1329 = vrot.slane %v1328, 4
        %v1330 = vmax.f32 %v1328, %v1329
        %v1331 = vrot.slane %v1330, 2
        %v1332 = vmax.f32 %v1330, %v1331
        %v1333 = vrot.slane %v1332, 1
        %v1334 = vmax.f32 %v1332, %v1333
        %v1335 = vmax.f32 %v1124, %v1130
        %v1336 = vmax.f32 %v1335, %v1136
        %v1337 = vmax.f32 %v1336, %v1142
        %v1338 = vmax.f32 %v1337, %v1148
        %v1339 = vmax.f32 %v1338, %v1154
        %v1340 = vmax.f32 %v1339, %v1160
        %v1341 = vmax.f32 %v1340, %v1166
        %v1342 = vrot.slane %v1341, 4
        %v1343 = vmax.f32 %v1341, %v1342
        %v1344 = vrot.slane %v1343, 2
        %v1345 = vmax.f32 %v1343, %v1344
        %v1346 = vrot.slane %v1345, 1
        %v1347 = vmax.f32 %v1345, %v1346
        %v1348 = vmax.f32 %v1126, %v1132
        %v1349 = vmax.f32 %v1348, %v1138
        %v1350 = vmax.f32 %v1349, %v1144
        %v1351 = vmax.f32 %v1350, %v1150
        %v1352 = vmax.f32 %v1351, %v1156
        %v1353 = vmax.f32 %v1352, %v1162
        %v1354 = vmax.f32 %v1353, %v1168
        %v1355 = vrot.slane %v1354, 4
        %v1356 = vmax.f32 %v1354, %v1355
        %v1357 = vrot.slane %v1356, 2
        %v1358 = vmax.f32 %v1356, %v1357
        %v1359 = vrot.slane %v1358, 1
        %v1360 = vmax.f32 %v1358, %v1359
        %v1361 = vmax.f32 %v1237, %v1243
        %v1362 = vmax.f32 %v1361, %v1249
        %v1363 = vmax.f32 %v1362, %v1255
        %v1364 = vmax.f32 %v1363, %v1261
        %v1365 = vmax.f32 %v1364, %v1267
        %v1366 = vmax.f32 %v1365, %v1273
        %v1367 = vmax.f32 %v1366, %v1279
        %v1368 = vrot.slane %v1367, 4
        %v1369 = vmax.f32 %v1367, %v1368
        %v1370 = vrot.slane %v1369, 2
        %v1371 = vmax.f32 %v1369, %v1370
        %v1372 = vrot.slane %v1371, 1
        %v1373 = vmax.f32 %v1371, %v1372
        %v1374 = vmax.f32 %v1239, %v1245
        %v1375 = vmax.f32 %v1374, %v1251
        %v1376 = vmax.f32 %v1375, %v1257
        %v1377 = vmax.f32 %v1376, %v1263
        %v1378 = vmax.f32 %v1377, %v1269
        %v1379 = vmax.f32 %v1378, %v1275
        %v1380 = vmax.f32 %v1379, %v1281
        %v1381 = vrot.slane %v1380, 4
        %v1382 = vmax.f32 %v1380, %v1381
        %v1383 = vrot.slane %v1382, 2
        %v1384 = vmax.f32 %v1382, %v1383
        %v1385 = vrot.slane %v1384, 1
        %v1386 = vmax.f32 %v1384, %v1385
        %p1387 = scmp.eq.s32.totalorder %s27, 0
        // Predicated region
        $region53: #{tpu_custom_call.1} parent=47 // pred_check
          %p1388 = pneg %p1387
        $region54: #{tpu_custom_call.1} parent=47 // pred_check_branch
          %1390 = sbr.rel (%p1388) target = $region56
        $region55: #{tpu_custom_call.1} parent=47 // pred_region
          %v1399 = vcombine.low %v1295, %v1308
          %v1400 = vcombine.low %v1321, %v1334
          %v1401 = vcombine.low %v1347, %v1360
          %v1402 = vcombine.low %v1373, %v1386
          %v1404 = vunpack.c.l.s4 1966171168
          %v1405 = vunpack.c.0.s8 %v1404
          %v1406 = vlaneseq
          %v1407 = vshrl.u32 %v1406, 7
          %v1408 = vsub.s32 %v1405, %v1407
          %v1409 = vrot.slane %v1399, %v1408
          %v1411 = vunpack.c.l.s4 1966171168
          %v1412 = vunpack.c.0.s8 %v1411
          %v1413 = vlaneseq
          %v1414 = vshrl.u32 %v1413, 7
          %v1415 = vsub.s32 %v1412, %v1414
          %v1416 = vrot.slane %v1400, %v1415
          %v1418 = vunpack.c.l.s4 1966171168
          %v1419 = vunpack.c.0.s8 %v1418
          %v1420 = vlaneseq
          %v1421 = vshrl.u32 %v1420, 7
          %v1422 = vsub.s32 %v1419, %v1421
          %v1423 = vrot.slane %v1401, %v1422
          %v1425 = vunpack.c.l.s4 1966171168
          %v1426 = vunpack.c.0.s8 %v1425
          %v1427 = vlaneseq
          %v1428 = vshrl.u32 %v1427, 7
          %v1429 = vsub.s32 %v1426, %v1428
          %v1430 = vrot.slane %v1402, %v1429
          %v1431 = vcombine.low %v1409, %v1416
          %v1432 = vcombine.low %v1423, %v1430
          %v1434 = vunpack.c.l.s4 1966171168
          %v1435 = vunpack.c.0.s8 %v1434
          %v1436 = vlaneseq
          %v1437 = vshrl.u32 %v1436, 7
          %v1438 = vsub.s32 %v1435, %v1437
          %v1439 = vrot.slane %v1431, %v1438
          %v1441 = vunpack.c.l.s4 1966171168
          %v1442 = vunpack.c.0.s8 %v1441
          %v1443 = vlaneseq
          %v1444 = vshrl.u32 %v1443, 7
          %v1445 = vsub.s32 %v1442, %v1444
          %v1446 = vrot.slane %v1432, %v1445
          %v1447 = vcombine.low %v1439, %v1446
          %1449 = vst [vmem:[%s309] sm:$0xff] %v1447
        $region56: #{tpu_custom_call.1} parent=47 // pred_fallthru
          _
        %p1450 = scmp.ne.s32.totalorder %s27, 0
        // Predicated region
        $region57: #{tpu_custom_call.1} parent=47 // pred_check
          %p1451 = pneg %p1450
        $region58: #{tpu_custom_call.1} parent=47 // pred_check_branch
          %1453 = sbr.rel (%p1451) target = $region60
        $region59: #{tpu_custom_call.1} parent=47 // pred_region
          %v1454 = vld [vmem:[%s309] sm:$0xff]
          %v1463 = vcombine.low %v1295, %v1308
          %v1464 = vcombine.low %v1321, %v1334
          %v1465 = vcombine.low %v1347, %v1360
          %v1466 = vcombine.low %v1373, %v1386
          %v1468 = vunpack.c.l.s4 1966171168
          %v1469 = vunpack.c.0.s8 %v1468
          %v1470 = vlaneseq
          %v1471 = vshrl.u32 %v1470, 7
          %v1472 = vsub.s32 %v1469, %v1471
          %v1473 = vrot.slane %v1463, %v1472
          %v1475 = vunpack.c.l.s4 1966171168
          %v1476 = vunpack.c.0.s8 %v1475
          %v1477 = vlaneseq
          %v1478 = vshrl.u32 %v1477, 7
          %v1479 = vsub.s32 %v1476, %v1478
          %v1480 = vrot.slane %v1464, %v1479
          %v1482 = vunpack.c.l.s4 1966171168
          %v1483 = vunpack.c.0.s8 %v1482
          %v1484 = vlaneseq
          %v1485 = vshrl.u32 %v1484, 7
          %v1486 = vsub.s32 %v1483, %v1485
          %v1487 = vrot.slane %v1465, %v1486
          %v1489 = vunpack.c.l.s4 1966171168
          %v1490 = vunpack.c.0.s8 %v1489
          %v1491 = vlaneseq
          %v1492 = vshrl.u32 %v1491, 7
          %v1493 = vsub.s32 %v1490, %v1492
          %v1494 = vrot.slane %v1466, %v1493
          %v1495 = vcombine.low %v1473, %v1480
          %v1496 = vcombine.low %v1487, %v1494
          %v1498 = vunpack.c.l.s4 1966171168
          %v1499 = vunpack.c.0.s8 %v1498
          %v1500 = vlaneseq
          %v1501 = vshrl.u32 %v1500, 7
          %v1502 = vsub.s32 %v1499, %v1501
          %v1503 = vrot.slane %v1495, %v1502
          %v1505 = vunpack.c.l.s4 1966171168
          %v1506 = vunpack.c.0.s8 %v1505
          %v1507 = vlaneseq
          %v1508 = vshrl.u32 %v1507, 7
          %v1509 = vsub.s32 %v1506, %v1508
          %v1510 = vrot.slane %v1496, %v1509
          %v1511 = vcombine.low %v1503, %v1510
          %v1513 = vmax.f32 %v1454, %v1511
          %1514 = vst [vmem:[%s309] sm:$0xff] %v1513
        $region60: #{tpu_custom_call.1} parent=47 // pred_fallthru
          _
        %s1515 = sand.u32 %s196, 1
        %s1516 = scalar_lea.sflag [#allocation4], %s1515
        %s1517 = sand.u32 %s196, 1
        %s1518 = smul.addr %s1517, 8
        %s1519 = scalar_lea.vmem [#allocation5], %s1518
        // Predicated region
        $region61: #{tpu_custom_call.1} parent=47 // pred_check
          %p1520 = pneg %p206
        $region62: #{tpu_custom_call.1} parent=47 // pred_check_branch
          %1522 = sbr.rel (%p1520) target = $region64
        $region63: #{tpu_custom_call.1} parent=47 // pred_region
          %s1524 = ssub.s32 128, 128
          %1525 = vsyncadd %s1516, %s1524
          %s1526 = smul.addr %s26, 8
          %s1527 = smul.addr %s1526, 16
          %s1528 = scalar_lea.hbm %s7, %s1527
          %s1530 = sshll.u32 %s1519, 4
          %s1531 = int_to_ptr.vmem [resolvable:$true] %s1530
          %1533 = dma.vmem_to_hbm [thread:$0]  %s1531, 128, %s1528, %s1516
        $region64: #{tpu_custom_call.1} parent=47 // pred_fallthru
          _
      $region48: #{tpu_custom_call.1} parent=5 // pred_fallthru
        _
      %p1534 = scmp.le.s32.totalorder 2, %s17
      // Predicated region
      $region65: #{tpu_custom_call.1} parent=5 // pred_check
        %p1535 = pneg %p1534
      $region66: #{tpu_custom_call.1} parent=5 // pred_check_branch
        %1537 = sbr.rel (%p1535) target = $region68
      $region67: #{tpu_custom_call.1} parent=5 // pred_region
        %s1538 = ssub.s32 %s17, 2
        // Predicated region
        $region69: #{tpu_custom_call.1} parent=67 // pred_check
          %p1539 = pneg %p212
        $region70: #{tpu_custom_call.1} parent=67 // pred_check_branch
          %1541 = sbr.rel (%p1539) target = $region72
        $region71: #{tpu_custom_call.1} parent=67 // pred_region
          %s1542 = sand.u32 %s197, 1
          %s1543 = scalar_lea.sflag [#allocation4], %s1542
          %s1544 = sand.u32 %s197, 1
          %s1545 = smul.addr %s1544, 8
          %s1546 = scalar_lea.vmem [#allocation5], %s1545
          %1547 = dma.done %s1543, 128
        $region72: #{tpu_custom_call.1} parent=67 // pred_fallthru
          _
      $region68: #{tpu_custom_call.1} parent=5 // pred_fallthru
        _
    $region6: #{tpu_custom_call.1} parent=1 // loop_footer
      %s21 = sadd.s32 1, %s17
    $region7: #{tpu_custom_call.1} parent=1 // loop_footer_branch
      %16 = sbr.rel target = $region3
    $region8: #{tpu_custom_call.1} parent=1 // loop_exit
      _
    %1548 = vsyncpa [#allocation3], 1
    %s1549 = scalar_lea.sflag [#allocation3], 1
    %1550 = vsyncpa %s1549, 1
    %1551 = vsyncpa [#allocation4], 1
    %s1552 = scalar_lea.sflag [#allocation4], 1
    %1553 = vsyncpa %s1552, 1

</llo_original>
